<compile_context>
chip_gen: v6e
topology: v6e:2x2x1
jax: 0.10.0
libtpu: 0.0.40
codegen_flags: <defaults>
</compile_context>

<pallas_src>
import functools

import jax
import jax.numpy as jnp
from jax.experimental import pallas as pl
from jax.experimental.pallas import tpu as pltpu

PAD = 128          # lane-dense width interior layers are padded to
N_LAYERS = 8
_ACTS = ("relu", "relu", "relu", "sigmoid", "relu", "relu", "relu", "none")


def _round_up(a, b):
    return ((a + b - 1) // b) * b


def _apply_act(y, act):
    if act == "relu":
        return jnp.maximum(y, 0.0)
    if act == "sigmoid":
        return jax.nn.sigmoid(y)
    return y


def _ae_kernel(x_ref, wf_ref, wm_ref, wl_ref, bm_ref, bl_ref, o_ref, *,
               compute_dtype):
    # x_ref:  (tile_m, d_pad)        wf_ref: (d_pad, 128)
    # wm_ref: (6, 128, 128)          wl_ref: (128, d_pad)
    # bm_ref: (7, 128)               bl_ref: (1, d_pad)
    h = x_ref[...].astype(jnp.float32)

    # Layer 0: bands -> 128.  Cast only the matmul operands (MXU); bias adds and
    # activations stay f32 on the VPU/EUP (v5e has no bf16 VPU/EUP datapath).
    y = jnp.dot(h.astype(compute_dtype), wf_ref[...],
                preferred_element_type=jnp.float32)
    h = _apply_act(y + bm_ref[0:1, :], _ACTS[0])

    # Layers 1..6: 128 -> 64 -> 32 -> 3 -> 32 -> 64 -> 128 (statically unrolled).
    for l in range(6):
        y = jnp.dot(h.astype(compute_dtype), wm_ref[l],
                    preferred_element_type=jnp.float32)
        h = _apply_act(y + bm_ref[l + 1:l + 2, :], _ACTS[l + 1])

    # Layer 7: 128 -> bands (identity).
    y = jnp.dot(h.astype(compute_dtype), wl_ref[...],
                preferred_element_type=jnp.float32)
    o_ref[...] = (y + bl_ref[...]).astype(o_ref.dtype)


def pack_params(params, bands, compute_dtype=jnp.float32):
    """Pack the 8 (W_t, b) pairs (W_t shaped (in, out)) into padded slabs.

    Every weight sits in a zero-padded block at [:in, :out]; rows beyond `in`
    are zero, which makes the sigmoid's 0.5 in padded lanes harmless for the
    following layer.  Biases sit in zero-padded rows.
    """
    d_pad = _round_up(max(bands, 1), PAD)

    w_first = jnp.zeros((d_pad, PAD), dtype=compute_dtype)
    w_first = w_first.at[:bands, :128].set(params[0][0].astype(compute_dtype))

    w_mid = jnp.zeros((6, PAD, PAD), dtype=compute_dtype)
    for l in range(1, 7):
        w_t = params[l][0]
        fi, fo = w_t.shape
        w_mid = w_mid.at[l - 1, :fi, :fo].set(w_t.astype(compute_dtype))

    w_last = jnp.zeros((PAD, d_pad), dtype=compute_dtype)
    w_last = w_last.at[:128, :bands].set(params[7][0].astype(compute_dtype))

    b_mid = jnp.zeros((7, PAD), dtype=jnp.float32)
    for l in range(7):
        b = params[l][1]
        b_mid = b_mid.at[l, :b.shape[0]].set(b.astype(jnp.float32))

    b_last = jnp.zeros((1, d_pad), dtype=jnp.float32)
    b_last = b_last.at[0, :bands].set(params[7][1].astype(jnp.float32))

    return w_first, w_mid, w_last, b_mid, b_last


def autoencoder_forward(x, params, *, tile_m=1024, compute_dtype=jnp.float32):
    """x: (batch, bands) float32. params: list of 8 (W_t, b), W_t shaped (in, out)."""
    m, bands = x.shape
    d_pad = _round_up(bands, PAD)

    w_first, w_mid, w_last, b_mid, b_last = pack_params(params, bands,
                                                        compute_dtype)

    # Clamp the row tile: keep double-buffered in+out tiles comfortably in VMEM.
    bytes_per_row = 4 * (2 * d_pad) * 2          # f32, in+out, double-buffered
    max_tm = max(8, ((8 << 20) // bytes_per_row) // 8 * 8)
    tm = min(tile_m, max_tm, _round_up(m, 8))
    m_pad = _round_up(m, tm)

    x_pad = jnp.zeros((m_pad, d_pad), dtype=x.dtype).at[:m, :bands].set(x)

    out_pad = pl.pallas_call(
        functools.partial(_ae_kernel, compute_dtype=compute_dtype),
        out_shape=jax.ShapeDtypeStruct((m_pad, d_pad), x.dtype),
        grid_spec=pltpu.PrefetchScalarGridSpec(
            num_scalar_prefetch=0,
            grid=(m_pad // tm,),
            in_specs=[
                pl.BlockSpec((tm, d_pad), lambda i: (i, 0)),        # activations
                pl.BlockSpec((d_pad, PAD), lambda i: (0, 0)),       # first weight (resident)
                pl.BlockSpec((6, PAD, PAD), lambda i: (0, 0, 0)),   # interior weights (resident)
                pl.BlockSpec((PAD, d_pad), lambda i: (0, 0)),       # last weight (resident)
                pl.BlockSpec((7, PAD), lambda i: (0, 0)),           # interior biases (resident)
                pl.BlockSpec((1, d_pad), lambda i: (0, 0)),         # last bias (resident)
            ],
            out_specs=pl.BlockSpec((tm, d_pad), lambda i: (i, 0)),  # lane-dense output
        ),
        compiler_params=pltpu.CompilerParams(
            dimension_semantics=("parallel",)),
    )(x_pad, w_first, w_mid, w_last, b_mid, b_last)

    return out_pad[:m, :bands]


def init_params(key, bands):
    """Deterministic synthetic parameters (mirrors nn.Linear shapes).

    PyTorch nn.Linear stores weight as (out, in); we store the transpose
    (in, out) so the kernel computes x @ W directly.
    """
    dims = [bands, 128, 64, 32, 3, 32, 64, 128, bands]
    params = []
    for i in range(N_LAYERS):
        key, kw, kb = jax.random.split(key, 3)
        fan_in, fan_out = dims[i], dims[i + 1]
        w_t = 0.05 * jax.random.normal(kw, (fan_in, fan_out), dtype=jnp.float32)
        b = 0.01 * jax.random.normal(kb, (fan_out,), dtype=jnp.float32)
        params.append((w_t, b))
    return params


def reference_forward(x, params):
    h = x
    for (w_t, b), act in zip(params, _ACTS):
        h = h @ w_t + b
        if act == "relu":
            h = jnp.maximum(h, 0.0)
        elif act == "sigmoid":
            h = jax.nn.sigmoid(h)
    return h


if __name__ == "__main__":
    key = jax.random.PRNGKey(0)

    # --- Case 1: small band count (bands <= 128), f32 path (tight check) ------
    BANDS, BATCH = 16, 64
    key, kx = jax.random.split(key)
    x = jax.random.normal(kx, (BATCH, BANDS), dtype=jnp.float32)
    params = init_params(key, BANDS)
    ref = reference_forward(x, params)

    out = jax.block_until_ready(autoencoder_forward(x, params))
    assert out.shape == (BATCH, BANDS), out.shape
    assert jnp.allclose(out, ref, atol=1e-4, rtol=1e-4), \
        float(jnp.max(jnp.abs(out - ref)))

    # bf16 matmul path (v6e/v7x MXU rate): loose check, f32 accumulation.
    out_bf16 = jax.block_until_ready(
        autoencoder_forward(x, params, compute_dtype=jnp.bfloat16))
    assert out_bf16.shape == (BATCH, BANDS), out_bf16.shape
    assert jnp.allclose(out_bf16, ref, atol=5e-2), \
        float(jnp.max(jnp.abs(out_bf16 - ref)))

    # --- Case 2: bands > 128 (hyperspectral), exercises the padded edges ------
    BANDS2, BATCH2 = 200, 16
    key, kx2 = jax.random.split(key)
    x2 = jax.random.normal(kx2, (BATCH2, BANDS2), dtype=jnp.float32)
    params2 = init_params(key, BANDS2)
    ref2 = reference_forward(x2, params2)

    out2 = jax.block_until_ready(autoencoder_forward(x2, params2))
    assert out2.shape == (BATCH2, BANDS2), out2.shape
    assert jnp.allclose(out2, ref2, atol=1e-4, rtol=1e-4), \
        float(jnp.max(jnp.abs(out2 - ref2)))

    print("KERNEL_OK")
</pallas_src>

<mosaic_0001>
module attributes {stable_mosaic.version = 11 : i64} {
  func.func @_ae_kernel(%arg0: i32, %arg1: memref<64x128xf32, #tpu.memory_space<vmem>>, %arg2: memref<128x128xf32, #tpu.memory_space<vmem>>, %arg3: memref<6x128x128xf32, #tpu.memory_space<vmem>>, %arg4: memref<128x128xf32, #tpu.memory_space<vmem>>, %arg5: memref<7x128xf32, #tpu.memory_space<vmem>>, %arg6: memref<1x128xf32, #tpu.memory_space<vmem>>, %arg7: memref<64x128xf32, #tpu.memory_space<vmem>>) attributes {dimension_semantics = [#tpu.dimension_semantics<parallel>], iteration_bounds = array<i64: 1>, scalar_prefetch = 0 : i64, scratch_operands = 0 : i64, tpu.core_type = #tpu.core_type<tc>, window_params = [{transform_indices = @transform_0, window_bounds = array<i64: 64, 128>}, {pipeline_mode = #tpu.pipeline_mode<synchronous>, transform_indices = @transform_1, window_bounds = array<i64: 128, 128>}, {pipeline_mode = #tpu.pipeline_mode<synchronous>, transform_indices = @transform_2, window_bounds = array<i64: 6, 128, 128>}, {pipeline_mode = #tpu.pipeline_mode<synchronous>, transform_indices = @transform_3, window_bounds = array<i64: 128, 128>}, {pipeline_mode = #tpu.pipeline_mode<synchronous>, transform_indices = @transform_4, window_bounds = array<i64: 7, 128>}, {pipeline_mode = #tpu.pipeline_mode<synchronous>, transform_indices = @transform_5, window_bounds = array<i64: 1, 128>}, {transform_indices = @transform_6, window_bounds = array<i64: 64, 128>}]} {
    %c0 = arith.constant 0 : index
    %c0_0 = arith.constant 0 : index
    %0 = vector.load %arg1[%c0, %c0_0] : memref<64x128xf32, #tpu.memory_space<vmem>>, vector<64x128xf32>
    %c0_1 = arith.constant 0 : index
    %c0_2 = arith.constant 0 : index
    %1 = vector.load %arg2[%c0_1, %c0_2] : memref<128x128xf32, #tpu.memory_space<vmem>>, vector<128x128xf32>
    %cst = arith.constant dense<0.000000e+00> : vector<64x128xf32>
    %2 = tpu.matmul %0, %1, %cst {dimension_numbers = #tpu.dot_dimension_numbers<[1], [0], [0], [1], [0, 0, 1, 1], [], []>} : vector<64x128xf32>, vector<128x128xf32>, vector<64x128xf32> -> vector<64x128xf32>
    %c0_3 = arith.constant 0 : index
    %c0_4 = arith.constant 0 : index
    %3 = vector.load %arg5[%c0_3, %c0_4] : memref<7x128xf32, #tpu.memory_space<vmem>>, vector<1x128xf32>
    %4 = vector.broadcast %3 : vector<1x128xf32> to vector<64x128xf32>
    %5 = arith.addf %2, %4 : vector<64x128xf32>
    %cst_5 = arith.constant 0.000000e+00 : f32
    %6 = vector.broadcast %cst_5 : f32 to vector<64x128xf32>
    %7 = arith.maximumf %5, %6 : vector<64x128xf32>
    %c0_6 = arith.constant 0 : index
    %c0_7 = arith.constant 0 : index
    %c0_8 = arith.constant 0 : index
    %8 = vector.load %arg3[%c0_6, %c0_7, %c0_8] : memref<6x128x128xf32, #tpu.memory_space<vmem>>, vector<1x128x128xf32>
    %9 = vector.shape_cast %8 : vector<1x128x128xf32> to vector<128x128xf32>
    %cst_9 = arith.constant dense<0.000000e+00> : vector<64x128xf32>
    %10 = tpu.matmul %7, %9, %cst_9 {dimension_numbers = #tpu.dot_dimension_numbers<[1], [0], [0], [1], [0, 0, 1, 1], [], []>} : vector<64x128xf32>, vector<128x128xf32>, vector<64x128xf32> -> vector<64x128xf32>
    %c1 = arith.constant 1 : index
    %c0_10 = arith.constant 0 : index
    %11 = vector.load %arg5[%c1, %c0_10] : memref<7x128xf32, #tpu.memory_space<vmem>>, vector<1x128xf32>
    %12 = vector.broadcast %11 : vector<1x128xf32> to vector<64x128xf32>
    %13 = arith.addf %10, %12 : vector<64x128xf32>
    %cst_11 = arith.constant 0.000000e+00 : f32
    %14 = vector.broadcast %cst_11 : f32 to vector<64x128xf32>
    %15 = arith.maximumf %13, %14 : vector<64x128xf32>
    %c1_12 = arith.constant 1 : index
    %c0_13 = arith.constant 0 : index
    %c0_14 = arith.constant 0 : index
    %16 = vector.load %arg3[%c1_12, %c0_13, %c0_14] : memref<6x128x128xf32, #tpu.memory_space<vmem>>, vector<1x128x128xf32>
    %17 = vector.shape_cast %16 : vector<1x128x128xf32> to vector<128x128xf32>
    %cst_15 = arith.constant dense<0.000000e+00> : vector<64x128xf32>
    %18 = tpu.matmul %15, %17, %cst_15 {dimension_numbers = #tpu.dot_dimension_numbers<[1], [0], [0], [1], [0, 0, 1, 1], [], []>} : vector<64x128xf32>, vector<128x128xf32>, vector<64x128xf32> -> vector<64x128xf32>
    %c2 = arith.constant 2 : index
    %c0_16 = arith.constant 0 : index
    %19 = vector.load %arg5[%c2, %c0_16] : memref<7x128xf32, #tpu.memory_space<vmem>>, vector<1x128xf32>
    %20 = vector.broadcast %19 : vector<1x128xf32> to vector<64x128xf32>
    %21 = arith.addf %18, %20 : vector<64x128xf32>
    %cst_17 = arith.constant 0.000000e+00 : f32
    %22 = vector.broadcast %cst_17 : f32 to vector<64x128xf32>
    %23 = arith.maximumf %21, %22 : vector<64x128xf32>
    %c2_18 = arith.constant 2 : index
    %c0_19 = arith.constant 0 : index
    %c0_20 = arith.constant 0 : index
    %24 = vector.load %arg3[%c2_18, %c0_19, %c0_20] : memref<6x128x128xf32, #tpu.memory_space<vmem>>, vector<1x128x128xf32>
    %25 = vector.shape_cast %24 : vector<1x128x128xf32> to vector<128x128xf32>
    %cst_21 = arith.constant dense<0.000000e+00> : vector<64x128xf32>
    %26 = tpu.matmul %23, %25, %cst_21 {dimension_numbers = #tpu.dot_dimension_numbers<[1], [0], [0], [1], [0, 0, 1, 1], [], []>} : vector<64x128xf32>, vector<128x128xf32>, vector<64x128xf32> -> vector<64x128xf32>
    %c3 = arith.constant 3 : index
    %c0_22 = arith.constant 0 : index
    %27 = vector.load %arg5[%c3, %c0_22] : memref<7x128xf32, #tpu.memory_space<vmem>>, vector<1x128xf32>
    %28 = vector.broadcast %27 : vector<1x128xf32> to vector<64x128xf32>
    %29 = arith.addf %26, %28 : vector<64x128xf32>
    %30 = arith.negf %29 : vector<64x128xf32>
    %31 = math.exp %30 : vector<64x128xf32>
    %cst_23 = arith.constant 1.000000e+00 : f32
    %32 = vector.broadcast %cst_23 : f32 to vector<64x128xf32>
    %33 = arith.addf %32, %31 : vector<64x128xf32>
    %34 = arith.divf %32, %33 : vector<64x128xf32>
    %c3_24 = arith.constant 3 : index
    %c0_25 = arith.constant 0 : index
    %c0_26 = arith.constant 0 : index
    %35 = vector.load %arg3[%c3_24, %c0_25, %c0_26] : memref<6x128x128xf32, #tpu.memory_space<vmem>>, vector<1x128x128xf32>
    %36 = vector.shape_cast %35 : vector<1x128x128xf32> to vector<128x128xf32>
    %cst_27 = arith.constant dense<0.000000e+00> : vector<64x128xf32>
    %37 = tpu.matmul %34, %36, %cst_27 {dimension_numbers = #tpu.dot_dimension_numbers<[1], [0], [0], [1], [0, 0, 1, 1], [], []>} : vector<64x128xf32>, vector<128x128xf32>, vector<64x128xf32> -> vector<64x128xf32>
    %c4 = arith.constant 4 : index
    %c0_28 = arith.constant 0 : index
    %38 = vector.load %arg5[%c4, %c0_28] : memref<7x128xf32, #tpu.memory_space<vmem>>, vector<1x128xf32>
    %39 = vector.broadcast %38 : vector<1x128xf32> to vector<64x128xf32>
    %40 = arith.addf %37, %39 : vector<64x128xf32>
    %cst_29 = arith.constant 0.000000e+00 : f32
    %41 = vector.broadcast %cst_29 : f32 to vector<64x128xf32>
    %42 = arith.maximumf %40, %41 : vector<64x128xf32>
    %c4_30 = arith.constant 4 : index
    %c0_31 = arith.constant 0 : index
    %c0_32 = arith.constant 0 : index
    %43 = vector.load %arg3[%c4_30, %c0_31, %c0_32] : memref<6x128x128xf32, #tpu.memory_space<vmem>>, vector<1x128x128xf32>
    %44 = vector.shape_cast %43 : vector<1x128x128xf32> to vector<128x128xf32>
    %cst_33 = arith.constant dense<0.000000e+00> : vector<64x128xf32>
    %45 = tpu.matmul %42, %44, %cst_33 {dimension_numbers = #tpu.dot_dimension_numbers<[1], [0], [0], [1], [0, 0, 1, 1], [], []>} : vector<64x128xf32>, vector<128x128xf32>, vector<64x128xf32> -> vector<64x128xf32>
    %c5 = arith.constant 5 : index
    %c0_34 = arith.constant 0 : index
    %46 = vector.load %arg5[%c5, %c0_34] : memref<7x128xf32, #tpu.memory_space<vmem>>, vector<1x128xf32>
    %47 = vector.broadcast %46 : vector<1x128xf32> to vector<64x128xf32>
    %48 = arith.addf %45, %47 : vector<64x128xf32>
    %cst_35 = arith.constant 0.000000e+00 : f32
    %49 = vector.broadcast %cst_35 : f32 to vector<64x128xf32>
    %50 = arith.maximumf %48, %49 : vector<64x128xf32>
    %c5_36 = arith.constant 5 : index
    %c0_37 = arith.constant 0 : index
    %c0_38 = arith.constant 0 : index
    %51 = vector.load %arg3[%c5_36, %c0_37, %c0_38] : memref<6x128x128xf32, #tpu.memory_space<vmem>>, vector<1x128x128xf32>
    %52 = vector.shape_cast %51 : vector<1x128x128xf32> to vector<128x128xf32>
    %cst_39 = arith.constant dense<0.000000e+00> : vector<64x128xf32>
    %53 = tpu.matmul %50, %52, %cst_39 {dimension_numbers = #tpu.dot_dimension_numbers<[1], [0], [0], [1], [0, 0, 1, 1], [], []>} : vector<64x128xf32>, vector<128x128xf32>, vector<64x128xf32> -> vector<64x128xf32>
    %c6 = arith.constant 6 : index
    %c0_40 = arith.constant 0 : index
    %54 = vector.load %arg5[%c6, %c0_40] : memref<7x128xf32, #tpu.memory_space<vmem>>, vector<1x128xf32>
    %55 = vector.broadcast %54 : vector<1x128xf32> to vector<64x128xf32>
    %56 = arith.addf %53, %55 : vector<64x128xf32>
    %cst_41 = arith.constant 0.000000e+00 : f32
    %57 = vector.broadcast %cst_41 : f32 to vector<64x128xf32>
    %58 = arith.maximumf %56, %57 : vector<64x128xf32>
    %c0_42 = arith.constant 0 : index
    %c0_43 = arith.constant 0 : index
    %59 = vector.load %arg4[%c0_42, %c0_43] : memref<128x128xf32, #tpu.memory_space<vmem>>, vector<128x128xf32>
    %cst_44 = arith.constant dense<0.000000e+00> : vector<64x128xf32>
    %60 = tpu.matmul %58, %59, %cst_44 {dimension_numbers = #tpu.dot_dimension_numbers<[1], [0], [0], [1], [0, 0, 1, 1], [], []>} : vector<64x128xf32>, vector<128x128xf32>, vector<64x128xf32> -> vector<64x128xf32>
    %c0_45 = arith.constant 0 : index
    %c0_46 = arith.constant 0 : index
    %61 = vector.load %arg6[%c0_45, %c0_46] : memref<1x128xf32, #tpu.memory_space<vmem>>, vector<1x128xf32>
    %62 = vector.broadcast %61 : vector<1x128xf32> to vector<64x128xf32>
    %63 = arith.addf %60, %62 : vector<64x128xf32>
    %c0_47 = arith.constant 0 : index
    %c0_48 = arith.constant 0 : index
    %64 = vector.load %arg7[%c0_47, %c0_48] : memref<64x128xf32, #tpu.memory_space<vmem>>, vector<64x128xf32>
    tpu.vector_store %arg7[%c0_47, %c0_48], %63 {strides = array<i32>} : memref<64x128xf32, #tpu.memory_space<vmem>>, vector<64x128xf32>,
    return
  }
  func.func @transform_0(%arg0: i32) -> (i32, i32) {
    %c0_i32 = arith.constant 0 : i32
    %c0_i32_0 = arith.constant 0 : i32
    return %arg0, %c0_i32 : i32, i32
  }
  func.func @transform_1(%arg0: i32) -> (i32, i32) {
    %c0_i32 = arith.constant 0 : i32
    %c0_i32_0 = arith.constant 0 : i32
    %c0_i32_1 = arith.constant 0 : i32
    return %c0_i32, %c0_i32_0 : i32, i32
  }
  func.func @transform_2(%arg0: i32) -> (i32, i32, i32) {
    %c0_i32 = arith.constant 0 : i32
    %c0_i32_0 = arith.constant 0 : i32
    %c0_i32_1 = arith.constant 0 : i32
    %c0_i32_2 = arith.constant 0 : i32
    return %c0_i32, %c0_i32_0, %c0_i32_1 : i32, i32, i32
  }
  func.func @transform_3(%arg0: i32) -> (i32, i32) {
    %c0_i32 = arith.constant 0 : i32
    %c0_i32_0 = arith.constant 0 : i32
    %c0_i32_1 = arith.constant 0 : i32
    return %c0_i32, %c0_i32_0 : i32, i32
  }
  func.func @transform_4(%arg0: i32) -> (i32, i32) {
    %c0_i32 = arith.constant 0 : i32
    %c0_i32_0 = arith.constant 0 : i32
    %c0_i32_1 = arith.constant 0 : i32
    return %c0_i32, %c0_i32_0 : i32, i32
  }
  func.func @transform_5(%arg0: i32) -> (i32, i32) {
    %c0_i32 = arith.constant 0 : i32
    %c0_i32_0 = arith.constant 0 : i32
    %c0_i32_1 = arith.constant 0 : i32
    return %c0_i32, %c0_i32_0 : i32, i32
  }
  func.func @transform_6(%arg0: i32) -> (i32, i32) {
    %c0_i32 = arith.constant 0 : i32
    %c0_i32_0 = arith.constant 0 : i32
    return %arg0, %c0_i32 : i32, i32
  }
}

</mosaic_0001>

<llo_original>
// kernel: tpu_custom_call.1
$region0: #{tpu_custom_call.1}
  #allocation0 [shape = 'u32[]', space=smem, size = 0x4, offset = 0x4, fixed_abs, tag = 'smem constant byte address 0x4 - core index']
  #allocation1 [shape = 'u32[144,128]{1,0:T(1,128)}', space=vmem, size = 0x12000, scoped, tag = 'internal scratch']
  %s0 = inlined_call_operand.hbm [shape: f32[64,128], index: 0, kind: input, shape index: {}]
  %s1 = inlined_call_operand.hbm [shape: f32[128,128], index: 1, kind: input, shape index: {}]
  %s2 = inlined_call_operand.hbm [shape: f32[6,128,128], index: 2, kind: input, shape index: {}]
  %s3 = inlined_call_operand.hbm [shape: f32[128,128], index: 3, kind: input, shape index: {}]
  %s4 = inlined_call_operand.hbm [shape: f32[7,128], index: 4, kind: input, shape index: {}]
  %s5 = inlined_call_operand.vmem [shape: f32[1,128], index: 5, kind: input, shape index: {}]
  %s6 = inlined_call_operand.hbm [shape: f32[64,128], index: 6, kind: output, shape index: {}]
  %s7 = sld [smem:[#allocation0]]
  $region54: #{tpu_custom_call.1} parent=0
    _
  %s9 = ssub.s32 1, %s7
  %s10 = scalar_select 0, %s9, %s7
  $region1: #{tpu_custom_call.1} parent=0
    #allocation2 [shape = 'u8[32768]{0}', space=vmem, size = 0x8000, scoped, tag = 'input window, operand 0, single buffered']
    #allocation3 [shape = 's32[1]{0}', space=sflag, size = 0x4, scoped, tag = 'scoped memory for tpu_custom_call.1']
    #allocation4 [shape = 's32[1]{0}', space=sflag, size = 0x4, scoped, tag = 'scoped memory for tpu_custom_call.1']
    #allocation5 [shape = 'u8[65536]{0}', space=vmem, size = 0x10000, scoped, tag = 'input window, operand 1, single buffered']
    #allocation6 [shape = 's32[1]{0}', space=sflag, size = 0x4, scoped, tag = 'scoped memory for tpu_custom_call.1']
    #allocation7 [shape = 'u8[393216]{0}', space=vmem, size = 0x60000, scoped, tag = 'input window, operand 2, single buffered']
    #allocation8 [shape = 'u8[65536]{0}', space=vmem, size = 0x10000, scoped, tag = 'input window, operand 3, single buffered']
    #allocation9 [shape = 's32[1]{0}', space=sflag, size = 0x4, scoped, tag = 'scoped memory for tpu_custom_call.1']
    #allocation10 [shape = 'u8[4096]{0}', space=vmem, size = 0x1000, scoped, tag = 'input window, operand 4, single buffered']
    #allocation11 [shape = 'u8[32768]{0}', space=vmem, size = 0x8000, scoped, tag = 'output window, operand 0, single buffered']
    %11 = vsyncpa [#allocation3], 0
    %12 = vsyncpa [#allocation6], 0
    %13 = vsyncpa [#allocation9], 0
    %14 = vsyncpa [#allocation4], 0
    // Predicated region
    $region2: #{tpu_custom_call.1} parent=1 // pred_check
      _
    $region3: #{tpu_custom_call.1} parent=1 // pred_check_branch
      %16 = sbr.rel (0) target = $region5
    $region4: #{tpu_custom_call.1} parent=1 // pred_region
      %s18 = ssub.s32 1024, 1024
      %19 = vsyncadd [#allocation3], %s18
      %s20 = sshll.u32 [#allocation2], 4
      %s21 = int_to_ptr.vmem [resolvable:$true] %s20
      %26 = dma.hbm_to_vmem [thread:$0]  %s0, 1024, %s21, [#allocation3], 128, 128, 8
    $region5: #{tpu_custom_call.1} parent=1 // pred_fallthru
      _
    // Predicated region
    $region6: #{tpu_custom_call.1} parent=1 // pred_check
      _
    $region7: #{tpu_custom_call.1} parent=1 // pred_check_branch
      %28 = sbr.rel (0) target = $region9
    $region8: #{tpu_custom_call.1} parent=1 // pred_region
      %s30 = ssub.s32 2048, 2048
      %31 = vsyncadd [#allocation6], %s30
      %s32 = sshll.u32 [#allocation5], 4
      %s33 = int_to_ptr.vmem [resolvable:$true] %s32
      %38 = dma.hbm_to_vmem [thread:$0]  %s1, 2048, %s33, [#allocation6], 128, 128, 8
    $region9: #{tpu_custom_call.1} parent=1 // pred_fallthru
      _
    // Predicated region
    $region10: #{tpu_custom_call.1} parent=1 // pred_check
      _
    $region11: #{tpu_custom_call.1} parent=1 // pred_check_branch
      %40 = sbr.rel (0) target = $region13
    $region12: #{tpu_custom_call.1} parent=1 // pred_region
      %s42 = ssub.s32 12288, 12288
      %43 = vsyncadd [#allocation6], %s42
      %s44 = sshll.u32 [#allocation7], 4
      %s45 = int_to_ptr.vmem [resolvable:$true] %s44
      %50 = dma.hbm_to_vmem [thread:$0]  %s2, 12288, %s45, [#allocation6], 128, 128, 8
    $region13: #{tpu_custom_call.1} parent=1 // pred_fallthru
      _
    // Predicated region
    $region14: #{tpu_custom_call.1} parent=1 // pred_check
      _
    $region15: #{tpu_custom_call.1} parent=1 // pred_check_branch
      %52 = sbr.rel (0) target = $region17
    $region16: #{tpu_custom_call.1} parent=1 // pred_region
      %s54 = ssub.s32 2048, 2048
      %55 = vsyncadd [#allocation9], %s54
      %s56 = sshll.u32 [#allocation8], 4
      %s57 = int_to_ptr.vmem [resolvable:$true] %s56
      %62 = dma.hbm_to_vmem [thread:$0]  %s3, 2048, %s57, [#allocation9], 128, 128, 8
    $region17: #{tpu_custom_call.1} parent=1 // pred_fallthru
      _
    // Predicated region
    $region18: #{tpu_custom_call.1} parent=1 // pred_check
      _
    $region19: #{tpu_custom_call.1} parent=1 // pred_check_branch
      %64 = sbr.rel (0) target = $region21
    $region20: #{tpu_custom_call.1} parent=1 // pred_region
      %s66 = ssub.s32 128, 128
      %67 = vsyncadd [#allocation9], %s66
      %s69 = sshll.u32 [#allocation10], 4
      %s70 = int_to_ptr.vmem [resolvable:$true] %s69
      %72 = dma.hbm_to_vmem [thread:$0]  %s4, 128, %s70, [#allocation9]
    $region21: #{tpu_custom_call.1} parent=1 // pred_fallthru
      _
    // Predicated region
    $region22: #{tpu_custom_call.1} parent=1 // pred_check
      _
    $region23: #{tpu_custom_call.1} parent=1 // pred_check_branch
      %74 = sbr.rel (0) target = $region25
    $region24: #{tpu_custom_call.1} parent=1 // pred_region
      _
    $region25: #{tpu_custom_call.1} parent=1 // pred_fallthru
      _
    // Predicated region
    $region26: #{tpu_custom_call.1} parent=1 // pred_check
      _
    $region27: #{tpu_custom_call.1} parent=1 // pred_check_branch
      %76 = sbr.rel (0) target = $region29
    $region28: #{tpu_custom_call.1} parent=1 // pred_region
      %77 = dma.done [#allocation3], 1024
    $region29: #{tpu_custom_call.1} parent=1 // pred_fallthru
      _
    // Predicated region
    $region30: #{tpu_custom_call.1} parent=1 // pred_check
      _
    $region31: #{tpu_custom_call.1} parent=1 // pred_check_branch
      %79 = sbr.rel (0) target = $region33
    $region32: #{tpu_custom_call.1} parent=1 // pred_region
      %80 = dma.done [#allocation6], 2048
    $region33: #{tpu_custom_call.1} parent=1 // pred_fallthru
      _
    // Predicated region
    $region34: #{tpu_custom_call.1} parent=1 // pred_check
      _
    $region35: #{tpu_custom_call.1} parent=1 // pred_check_branch
      %82 = sbr.rel (0) target = $region37
    $region36: #{tpu_custom_call.1} parent=1 // pred_region
      %83 = dma.done [#allocation6], 12288
    $region37: #{tpu_custom_call.1} parent=1 // pred_fallthru
      _
    // Predicated region
    $region38: #{tpu_custom_call.1} parent=1 // pred_check
      _
    $region39: #{tpu_custom_call.1} parent=1 // pred_check_branch
      %85 = sbr.rel (0) target = $region41
    $region40: #{tpu_custom_call.1} parent=1 // pred_region
      %86 = dma.done [#allocation9], 2048
    $region41: #{tpu_custom_call.1} parent=1 // pred_fallthru
      _
    // Predicated region
    $region42: #{tpu_custom_call.1} parent=1 // pred_check
      _
    $region43: #{tpu_custom_call.1} parent=1 // pred_check_branch
      %88 = sbr.rel (0) target = $region45
    $region44: #{tpu_custom_call.1} parent=1 // pred_region
      %89 = dma.done [#allocation9], 128
    $region45: #{tpu_custom_call.1} parent=1 // pred_fallthru
      _
    %v90 = vld [vmem:[#allocation2] sm:$0xff]
    %v91 = vld [vmem:[#allocation2 + $0x8] sm:$0xff]
    %v92 = vld [vmem:[#allocation2 + $0x10] sm:$0xff]
    %v93 = vld [vmem:[#allocation2 + $0x18] sm:$0xff]
    %v94 = vld [vmem:[#allocation2 + $0x20] sm:$0xff]
    %v95 = vld [vmem:[#allocation2 + $0x28] sm:$0xff]
    %v96 = vld [vmem:[#allocation2 + $0x30] sm:$0xff]
    %v97 = vld [vmem:[#allocation2 + $0x38] sm:$0xff]
    %v98 = vld [vmem:[#allocation5] sm:$0xff]
    %v99 = vld [vmem:[#allocation5 + $0x8] sm:$0xff]
    %v100 = vld [vmem:[#allocation5 + $0x10] sm:$0xff]
    %v101 = vld [vmem:[#allocation5 + $0x18] sm:$0xff]
    %v102 = vld [vmem:[#allocation5 + $0x20] sm:$0xff]
    %v103 = vld [vmem:[#allocation5 + $0x28] sm:$0xff]
    %v104 = vld [vmem:[#allocation5 + $0x30] sm:$0xff]
    %v105 = vld [vmem:[#allocation5 + $0x38] sm:$0xff]
    %v106 = vld [vmem:[#allocation5 + $0x40] sm:$0xff]
    %v107 = vld [vmem:[#allocation5 + $0x48] sm:$0xff]
    %v108 = vld [vmem:[#allocation5 + $0x50] sm:$0xff]
    %v109 = vld [vmem:[#allocation5 + $0x58] sm:$0xff]
    %v110 = vld [vmem:[#allocation5 + $0x60] sm:$0xff]
    %v111 = vld [vmem:[#allocation5 + $0x68] sm:$0xff]
    %v112 = vld [vmem:[#allocation5 + $0x70] sm:$0xff]
    %v113 = vld [vmem:[#allocation5 + $0x78] sm:$0xff]
    %v114 = vld [vmem:[#allocation10] sm:$0x1]
    %v115 = vlaneseq
    %v116 = vshrl.u32 %v115, 7
    %v117 = vsub.s32 0, %v116
    %v118 = vrot.slane %v114, %v117
    %119 = vmatprep.subr.mxu0 0.0
    %120 = vmatpush1.msra.mxu0 %v113
    %121 = vmatprep.subr.mxu0 0.0
    %122 = vmatpush1.msra.mxu0 %v112
    %123 = vmatprep.subr.mxu0 0.0
    %124 = vmatpush1.msra.mxu0 %v111
    %125 = vmatprep.subr.mxu0 0.0
    %126 = vmatpush1.msra.mxu0 %v110
    %127 = vmatprep.subr.mxu0 0.0
    %128 = vmatpush1.msra.mxu0 %v109
    %129 = vmatprep.subr.mxu0 0.0
    %130 = vmatpush1.msra.mxu0 %v108
    %131 = vmatprep.subr.mxu0 0.0
    %132 = vmatpush1.msra.mxu0 %v107
    %133 = vmatprep.subr.mxu0 0.0
    %134 = vmatpush1.msra.mxu0 %v106
    %135 = vmatprep.subr.mxu0 0.0
    %136 = vmatpush1.msra.mxu0 %v105
    %137 = vmatprep.subr.mxu0 0.0
    %138 = vmatpush1.msra.mxu0 %v104
    %139 = vmatprep.subr.mxu0 0.0
    %140 = vmatpush1.msra.mxu0 %v103
    %141 = vmatprep.subr.mxu0 0.0
    %142 = vmatpush1.msra.mxu0 %v102
    %143 = vmatprep.subr.mxu0 0.0
    %144 = vmatpush1.msra.mxu0 %v101
    %145 = vmatprep.subr.mxu0 0.0
    %146 = vmatpush1.msra.mxu0 %v100
    %147 = vmatprep.subr.mxu0 0.0
    %148 = vmatpush1.msra.mxu0 %v99
    %149 = vmatprep.subr.mxu0 0.0
    %150 = vmatpush1.msra.mxu0 %v98
    %151 = vmatprep.subr.mxu0 0.0
    %152 = vmatpush2.msra.mxu0 0.0
    %153 = vmatprep.subr.mxu0 0.0
    %154 = vmatpush2.msra.mxu0 0.0
    %155 = vmatprep.subr.mxu0 0.0
    %156 = vmatpush2.msra.mxu0 0.0
    %157 = vmatprep.subr.mxu0 0.0
    %158 = vmatpush2.msra.mxu0 0.0
    %159 = vmatprep.subr.mxu0 0.0
    %160 = vmatpush2.msra.mxu0 0.0
    %161 = vmatprep.subr.mxu0 0.0
    %162 = vmatpush2.msra.mxu0 0.0
    %163 = vmatprep.subr.mxu0 0.0
    %164 = vmatpush2.msra.mxu0 0.0
    %165 = vmatprep.subr.mxu0 0.0
    %166 = vmatpush2.msra.mxu0 0.0
    %167 = vmatprep.subr.mxu0 0.0
    %168 = vmatpush2.msra.mxu0 0.0
    %169 = vmatprep.subr.mxu0 0.0
    %170 = vmatpush2.msra.mxu0 0.0
    %171 = vmatprep.subr.mxu0 0.0
    %172 = vmatpush2.msra.mxu0 0.0
    %173 = vmatprep.subr.mxu0 0.0
    %174 = vmatpush2.msra.mxu0 0.0
    %175 = vmatprep.subr.mxu0 0.0
    %176 = vmatpush2.msra.mxu0 0.0
    %177 = vmatprep.subr.mxu0 0.0
    %178 = vmatpush2.msra.mxu0 0.0
    %179 = vmatprep.subr.mxu0 0.0
    %180 = vmatpush2.msra.mxu0 0.0
    %181 = vmatprep.subr.mxu0 0.0
    %182 = vmatpush2.msra.mxu0 0.0
    %183 = vmatprep.mubr.f32.mxu0 0.0
    %184 = vmatmul.mubr.f32.gmra.mxu0 %v90
    %v185 = vpop.f32.mrf.mxu0
    %v186 = vadd.f32 %v118, %v185
    %v187 = vpop.f32.mrf.mxu0
    %188 = vmatprep.mubr.f32.mxu0 0.0
    %189 = vmatmul.mubr.f32.gmra.mxu0 %v91
    %v190 = vpop.f32.mrf.mxu0
    %v191 = vadd.f32 %v118, %v190
    %v192 = vpop.f32.mrf.mxu0
    %193 = vmatprep.mubr.f32.mxu0 0.0
    %194 = vmatmul.mubr.f32.gmra.mxu0 %v92
    %v195 = vpop.f32.mrf.mxu0
    %v196 = vadd.f32 %v118, %v195
    %v197 = vpop.f32.mrf.mxu0
    %198 = vmatprep.mubr.f32.mxu0 0.0
    %199 = vmatmul.mubr.f32.gmra.mxu0 %v93
    %v200 = vpop.f32.mrf.mxu0
    %v201 = vadd.f32 %v118, %v200
    %v202 = vpop.f32.mrf.mxu0
    %203 = vmatprep.mubr.f32.mxu0 0.0
    %204 = vmatmul.mubr.f32.gmra.mxu0 %v94
    %v205 = vpop.f32.mrf.mxu0
    %v206 = vadd.f32 %v118, %v205
    %v207 = vpop.f32.mrf.mxu0
    %208 = vmatprep.mubr.f32.mxu0 0.0
    %209 = vmatmul.mubr.f32.gmra.mxu0 %v95
    %v210 = vpop.f32.mrf.mxu0
    %v211 = vadd.f32 %v118, %v210
    %v212 = vpop.f32.mrf.mxu0
    %213 = vmatprep.mubr.f32.mxu0 0.0
    %214 = vmatmul.mubr.f32.gmra.mxu0 %v96
    %v215 = vpop.f32.mrf.mxu0
    %v216 = vadd.f32 %v118, %v215
    %v217 = vpop.f32.mrf.mxu0
    %218 = vmatprep.mubr.f32.mxu0 0.0
    %219 = vmatmul.mubr.f32.gmra.mxu0 %v97
    %v220 = vpop.f32.mrf.mxu0
    %v221 = vadd.f32 %v118, %v220
    %v222 = vpop.f32.mrf.mxu0
    %223 = vdwg.mxu0
    %v224 = vmax.f32 %v186, 0.0
    %v225 = vmax.f32 %v191, 0.0
    %v226 = vmax.f32 %v196, 0.0
    %v227 = vmax.f32 %v201, 0.0
    %v228 = vmax.f32 %v206, 0.0
    %v229 = vmax.f32 %v211, 0.0
    %v230 = vmax.f32 %v216, 0.0
    %v231 = vmax.f32 %v221, 0.0
    %v232 = vld [vmem:[#allocation7] sm:$0xff]
    %v233 = vld [vmem:[#allocation7 + $0x8] sm:$0xff]
    %v234 = vld [vmem:[#allocation7 + $0x10] sm:$0xff]
    %v235 = vld [vmem:[#allocation7 + $0x18] sm:$0xff]
    %v236 = vld [vmem:[#allocation7 + $0x20] sm:$0xff]
    %v237 = vld [vmem:[#allocation7 + $0x28] sm:$0xff]
    %v238 = vld [vmem:[#allocation7 + $0x30] sm:$0xff]
    %v239 = vld [vmem:[#allocation7 + $0x38] sm:$0xff]
    %v240 = vld [vmem:[#allocation7 + $0x40] sm:$0xff]
    %v241 = vld [vmem:[#allocation7 + $0x48] sm:$0xff]
    %v242 = vld [vmem:[#allocation7 + $0x50] sm:$0xff]
    %v243 = vld [vmem:[#allocation7 + $0x58] sm:$0xff]
    %v244 = vld [vmem:[#allocation7 + $0x60] sm:$0xff]
    %v245 = vld [vmem:[#allocation7 + $0x68] sm:$0xff]
    %v246 = vld [vmem:[#allocation7 + $0x70] sm:$0xff]
    %v247 = vld [vmem:[#allocation7 + $0x78] sm:$0xff]
    %v248 = vld [vmem:[#allocation10 + $0x1] sm:$0x1]
    %v249 = vlaneseq
    %v250 = vshrl.u32 %v249, 7
    %v251 = vsub.s32 0, %v250
    %v252 = vrot.slane %v248, %v251
    %253 = vmatprep.subr.mxu0 0.0
    %254 = vmatpush1.msra.mxu0 %v247
    %255 = vmatprep.subr.mxu0 0.0
    %256 = vmatpush1.msra.mxu0 %v246
    %257 = vmatprep.subr.mxu0 0.0
    %258 = vmatpush1.msra.mxu0 %v245
    %259 = vmatprep.subr.mxu0 0.0
    %260 = vmatpush1.msra.mxu0 %v244
    %261 = vmatprep.subr.mxu0 0.0
    %262 = vmatpush1.msra.mxu0 %v243
    %263 = vmatprep.subr.mxu0 0.0
    %264 = vmatpush1.msra.mxu0 %v242
    %265 = vmatprep.subr.mxu0 0.0
    %266 = vmatpush1.msra.mxu0 %v241
    %267 = vmatprep.subr.mxu0 0.0
    %268 = vmatpush1.msra.mxu0 %v240
    %269 = vmatprep.subr.mxu0 0.0
    %270 = vmatpush1.msra.mxu0 %v239
    %271 = vmatprep.subr.mxu0 0.0
    %272 = vmatpush1.msra.mxu0 %v238
    %273 = vmatprep.subr.mxu0 0.0
    %274 = vmatpush1.msra.mxu0 %v237
    %275 = vmatprep.subr.mxu0 0.0
    %276 = vmatpush1.msra.mxu0 %v236
    %277 = vmatprep.subr.mxu0 0.0
    %278 = vmatpush1.msra.mxu0 %v235
    %279 = vmatprep.subr.mxu0 0.0
    %280 = vmatpush1.msra.mxu0 %v234
    %281 = vmatprep.subr.mxu0 0.0
    %282 = vmatpush1.msra.mxu0 %v233
    %283 = vmatprep.subr.mxu0 0.0
    %284 = vmatpush1.msra.mxu0 %v232
    %285 = vmatprep.subr.mxu0 0.0
    %286 = vmatpush2.msra.mxu0 0.0
    %287 = vmatprep.subr.mxu0 0.0
    %288 = vmatpush2.msra.mxu0 0.0
    %289 = vmatprep.subr.mxu0 0.0
    %290 = vmatpush2.msra.mxu0 0.0
    %291 = vmatprep.subr.mxu0 0.0
    %292 = vmatpush2.msra.mxu0 0.0
    %293 = vmatprep.subr.mxu0 0.0
    %294 = vmatpush2.msra.mxu0 0.0
    %295 = vmatprep.subr.mxu0 0.0
    %296 = vmatpush2.msra.mxu0 0.0
    %297 = vmatprep.subr.mxu0 0.0
    %298 = vmatpush2.msra.mxu0 0.0
    %299 = vmatprep.subr.mxu0 0.0
    %300 = vmatpush2.msra.mxu0 0.0
    %301 = vmatprep.subr.mxu0 0.0
    %302 = vmatpush2.msra.mxu0 0.0
    %303 = vmatprep.subr.mxu0 0.0
    %304 = vmatpush2.msra.mxu0 0.0
    %305 = vmatprep.subr.mxu0 0.0
    %306 = vmatpush2.msra.mxu0 0.0
    %307 = vmatprep.subr.mxu0 0.0
    %308 = vmatpush2.msra.mxu0 0.0
    %309 = vmatprep.subr.mxu0 0.0
    %310 = vmatpush2.msra.mxu0 0.0
    %311 = vmatprep.subr.mxu0 0.0
    %312 = vmatpush2.msra.mxu0 0.0
    %313 = vmatprep.subr.mxu0 0.0
    %314 = vmatpush2.msra.mxu0 0.0
    %315 = vmatprep.subr.mxu0 0.0
    %316 = vmatpush2.msra.mxu0 0.0
    %317 = vmatprep.mubr.f32.mxu0 0.0
    %318 = vmatmul.mubr.f32.gmra.mxu0 %v224
    %v319 = vpop.f32.mrf.mxu0
    %v320 = vadd.f32 %v252, %v319
    %v321 = vpop.f32.mrf.mxu0
    %322 = vmatprep.mubr.f32.mxu0 0.0
    %323 = vmatmul.mubr.f32.gmra.mxu0 %v225
    %v324 = vpop.f32.mrf.mxu0
    %v325 = vadd.f32 %v252, %v324
    %v326 = vpop.f32.mrf.mxu0
    %327 = vmatprep.mubr.f32.mxu0 0.0
    %328 = vmatmul.mubr.f32.gmra.mxu0 %v226
    %v329 = vpop.f32.mrf.mxu0
    %v330 = vadd.f32 %v252, %v329
    %v331 = vpop.f32.mrf.mxu0
    %332 = vmatprep.mubr.f32.mxu0 0.0
    %333 = vmatmul.mubr.f32.gmra.mxu0 %v227
    %v334 = vpop.f32.mrf.mxu0
    %v335 = vadd.f32 %v252, %v334
    %v336 = vpop.f32.mrf.mxu0
    %337 = vmatprep.mubr.f32.mxu0 0.0
    %338 = vmatmul.mubr.f32.gmra.mxu0 %v228
    %v339 = vpop.f32.mrf.mxu0
    %v340 = vadd.f32 %v252, %v339
    %v341 = vpop.f32.mrf.mxu0
    %342 = vmatprep.mubr.f32.mxu0 0.0
    %343 = vmatmul.mubr.f32.gmra.mxu0 %v229
    %v344 = vpop.f32.mrf.mxu0
    %v345 = vadd.f32 %v252, %v344
    %v346 = vpop.f32.mrf.mxu0
    %347 = vmatprep.mubr.f32.mxu0 0.0
    %348 = vmatmul.mubr.f32.gmra.mxu0 %v230
    %v349 = vpop.f32.mrf.mxu0
    %v350 = vadd.f32 %v252, %v349
    %v351 = vpop.f32.mrf.mxu0
    %352 = vmatprep.mubr.f32.mxu0 0.0
    %353 = vmatmul.mubr.f32.gmra.mxu0 %v231
    %v354 = vpop.f32.mrf.mxu0
    %v355 = vadd.f32 %v252, %v354
    %v356 = vpop.f32.mrf.mxu0
    %357 = vdwg.mxu0
    %v358 = vmax.f32 %v320, 0.0
    %v359 = vmax.f32 %v325, 0.0
    %v360 = vmax.f32 %v330, 0.0
    %v361 = vmax.f32 %v335, 0.0
    %v362 = vmax.f32 %v340, 0.0
    %v363 = vmax.f32 %v345, 0.0
    %v364 = vmax.f32 %v350, 0.0
    %v365 = vmax.f32 %v355, 0.0
    %s366 = scalar_lea.vmem [#allocation7], 128
    %v367 = vld [vmem:[%s366] sm:$0xff]
    %v368 = vld [vmem:[%s366 + $0x8] sm:$0xff]
    %v369 = vld [vmem:[%s366 + $0x10] sm:$0xff]
    %v370 = vld [vmem:[%s366 + $0x18] sm:$0xff]
    %v371 = vld [vmem:[%s366 + $0x20] sm:$0xff]
    %v372 = vld [vmem:[%s366 + $0x28] sm:$0xff]
    %v373 = vld [vmem:[%s366 + $0x30] sm:$0xff]
    %v374 = vld [vmem:[%s366 + $0x38] sm:$0xff]
    %v375 = vld [vmem:[%s366 + $0x40] sm:$0xff]
    %v376 = vld [vmem:[%s366 + $0x48] sm:$0xff]
    %v377 = vld [vmem:[%s366 + $0x50] sm:$0xff]
    %v378 = vld [vmem:[%s366 + $0x58] sm:$0xff]
    %v379 = vld [vmem:[%s366 + $0x60] sm:$0xff]
    %v380 = vld [vmem:[%s366 + $0x68] sm:$0xff]
    %v381 = vld [vmem:[%s366 + $0x70] sm:$0xff]
    %v382 = vld [vmem:[%s366 + $0x78] sm:$0xff]
    %v383 = vld [vmem:[#allocation10 + $0x2] sm:$0x1]
    %v384 = vlaneseq
    %v385 = vshrl.u32 %v384, 7
    %v386 = vsub.s32 0, %v385
    %v387 = vrot.slane %v383, %v386
    %388 = vmatprep.subr.mxu0 0.0
    %389 = vmatpush1.msra.mxu0 %v382
    %390 = vmatprep.subr.mxu0 0.0
    %391 = vmatpush1.msra.mxu0 %v381
    %392 = vmatprep.subr.mxu0 0.0
    %393 = vmatpush1.msra.mxu0 %v380
    %394 = vmatprep.subr.mxu0 0.0
    %395 = vmatpush1.msra.mxu0 %v379
    %396 = vmatprep.subr.mxu0 0.0
    %397 = vmatpush1.msra.mxu0 %v378
    %398 = vmatprep.subr.mxu0 0.0
    %399 = vmatpush1.msra.mxu0 %v377
    %400 = vmatprep.subr.mxu0 0.0
    %401 = vmatpush1.msra.mxu0 %v376
    %402 = vmatprep.subr.mxu0 0.0
    %403 = vmatpush1.msra.mxu0 %v375
    %404 = vmatprep.subr.mxu0 0.0
    %405 = vmatpush1.msra.mxu0 %v374
    %406 = vmatprep.subr.mxu0 0.0
    %407 = vmatpush1.msra.mxu0 %v373
    %408 = vmatprep.subr.mxu0 0.0
    %409 = vmatpush1.msra.mxu0 %v372
    %410 = vmatprep.subr.mxu0 0.0
    %411 = vmatpush1.msra.mxu0 %v371
    %412 = vmatprep.subr.mxu0 0.0
    %413 = vmatpush1.msra.mxu0 %v370
    %414 = vmatprep.subr.mxu0 0.0
    %415 = vmatpush1.msra.mxu0 %v369
    %416 = vmatprep.subr.mxu0 0.0
    %417 = vmatpush1.msra.mxu0 %v368
    %418 = vmatprep.subr.mxu0 0.0
    %419 = vmatpush1.msra.mxu0 %v367
    %420 = vmatprep.subr.mxu0 0.0
    %421 = vmatpush2.msra.mxu0 0.0
    %422 = vmatprep.subr.mxu0 0.0
    %423 = vmatpush2.msra.mxu0 0.0
    %424 = vmatprep.subr.mxu0 0.0
    %425 = vmatpush2.msra.mxu0 0.0
    %426 = vmatprep.subr.mxu0 0.0
    %427 = vmatpush2.msra.mxu0 0.0
    %428 = vmatprep.subr.mxu0 0.0
    %429 = vmatpush2.msra.mxu0 0.0
    %430 = vmatprep.subr.mxu0 0.0
    %431 = vmatpush2.msra.mxu0 0.0
    %432 = vmatprep.subr.mxu0 0.0
    %433 = vmatpush2.msra.mxu0 0.0
    %434 = vmatprep.subr.mxu0 0.0
    %435 = vmatpush2.msra.mxu0 0.0
    %436 = vmatprep.subr.mxu0 0.0
    %437 = vmatpush2.msra.mxu0 0.0
    %438 = vmatprep.subr.mxu0 0.0
    %439 = vmatpush2.msra.mxu0 0.0
    %440 = vmatprep.subr.mxu0 0.0
    %441 = vmatpush2.msra.mxu0 0.0
    %442 = vmatprep.subr.mxu0 0.0
    %443 = vmatpush2.msra.mxu0 0.0
    %444 = vmatprep.subr.mxu0 0.0
    %445 = vmatpush2.msra.mxu0 0.0
    %446 = vmatprep.subr.mxu0 0.0
    %447 = vmatpush2.msra.mxu0 0.0
    %448 = vmatprep.subr.mxu0 0.0
    %449 = vmatpush2.msra.mxu0 0.0
    %450 = vmatprep.subr.mxu0 0.0
    %451 = vmatpush2.msra.mxu0 0.0
    %452 = vmatprep.mubr.f32.mxu0 0.0
    %453 = vmatmul.mubr.f32.gmra.mxu0 %v358
    %v454 = vpop.f32.mrf.mxu0
    %v455 = vadd.f32 %v387, %v454
    %v456 = vpop.f32.mrf.mxu0
    %457 = vmatprep.mubr.f32.mxu0 0.0
    %458 = vmatmul.mubr.f32.gmra.mxu0 %v359
    %v459 = vpop.f32.mrf.mxu0
    %v460 = vadd.f32 %v387, %v459
    %v461 = vpop.f32.mrf.mxu0
    %462 = vmatprep.mubr.f32.mxu0 0.0
    %463 = vmatmul.mubr.f32.gmra.mxu0 %v360
    %v464 = vpop.f32.mrf.mxu0
    %v465 = vadd.f32 %v387, %v464
    %v466 = vpop.f32.mrf.mxu0
    %467 = vmatprep.mubr.f32.mxu0 0.0
    %468 = vmatmul.mubr.f32.gmra.mxu0 %v361
    %v469 = vpop.f32.mrf.mxu0
    %v470 = vadd.f32 %v387, %v469
    %v471 = vpop.f32.mrf.mxu0
    %472 = vmatprep.mubr.f32.mxu0 0.0
    %473 = vmatmul.mubr.f32.gmra.mxu0 %v362
    %v474 = vpop.f32.mrf.mxu0
    %v475 = vadd.f32 %v387, %v474
    %v476 = vpop.f32.mrf.mxu0
    %477 = vmatprep.mubr.f32.mxu0 0.0
    %478 = vmatmul.mubr.f32.gmra.mxu0 %v363
    %v479 = vpop.f32.mrf.mxu0
    %v480 = vadd.f32 %v387, %v479
    %v481 = vpop.f32.mrf.mxu0
    %482 = vmatprep.mubr.f32.mxu0 0.0
    %483 = vmatmul.mubr.f32.gmra.mxu0 %v364
    %v484 = vpop.f32.mrf.mxu0
    %v485 = vadd.f32 %v387, %v484
    %v486 = vpop.f32.mrf.mxu0
    %487 = vmatprep.mubr.f32.mxu0 0.0
    %488 = vmatmul.mubr.f32.gmra.mxu0 %v365
    %v489 = vpop.f32.mrf.mxu0
    %v490 = vadd.f32 %v387, %v489
    %v491 = vpop.f32.mrf.mxu0
    %492 = vdwg.mxu0
    %v493 = vmax.f32 %v455, 0.0
    %v494 = vmax.f32 %v460, 0.0
    %v495 = vmax.f32 %v465, 0.0
    %v496 = vmax.f32 %v470, 0.0
    %v497 = vmax.f32 %v475, 0.0
    %v498 = vmax.f32 %v480, 0.0
    %v499 = vmax.f32 %v485, 0.0
    %v500 = vmax.f32 %v490, 0.0
    %s501 = scalar_lea.vmem [#allocation7], 256
    %v502 = vld [vmem:[%s501] sm:$0xff]
    %v503 = vld [vmem:[%s501 + $0x8] sm:$0xff]
    %v504 = vld [vmem:[%s501 + $0x10] sm:$0xff]
    %v505 = vld [vmem:[%s501 + $0x18] sm:$0xff]
    %v506 = vld [vmem:[%s501 + $0x20] sm:$0xff]
    %v507 = vld [vmem:[%s501 + $0x28] sm:$0xff]
    %v508 = vld [vmem:[%s501 + $0x30] sm:$0xff]
    %v509 = vld [vmem:[%s501 + $0x38] sm:$0xff]
    %v510 = vld [vmem:[%s501 + $0x40] sm:$0xff]
    %v511 = vld [vmem:[%s501 + $0x48] sm:$0xff]
    %v512 = vld [vmem:[%s501 + $0x50] sm:$0xff]
    %v513 = vld [vmem:[%s501 + $0x58] sm:$0xff]
    %v514 = vld [vmem:[%s501 + $0x60] sm:$0xff]
    %v515 = vld [vmem:[%s501 + $0x68] sm:$0xff]
    %v516 = vld [vmem:[%s501 + $0x70] sm:$0xff]
    %v517 = vld [vmem:[%s501 + $0x78] sm:$0xff]
    %v518 = vld [vmem:[#allocation10 + $0x3] sm:$0x1]
    %v519 = vlaneseq
    %v520 = vshrl.u32 %v519, 7
    %v521 = vsub.s32 0, %v520
    %v522 = vrot.slane %v518, %v521
    %523 = vmatprep.subr.mxu0 0.0
    %524 = vmatpush1.msra.mxu0 %v517
    %525 = vmatprep.subr.mxu0 0.0
    %526 = vmatpush1.msra.mxu0 %v516
    %527 = vmatprep.subr.mxu0 0.0
    %528 = vmatpush1.msra.mxu0 %v515
    %529 = vmatprep.subr.mxu0 0.0
    %530 = vmatpush1.msra.mxu0 %v514
    %531 = vmatprep.subr.mxu0 0.0
    %532 = vmatpush1.msra.mxu0 %v513
    %533 = vmatprep.subr.mxu0 0.0
    %534 = vmatpush1.msra.mxu0 %v512
    %535 = vmatprep.subr.mxu0 0.0
    %536 = vmatpush1.msra.mxu0 %v511
    %537 = vmatprep.subr.mxu0 0.0
    %538 = vmatpush1.msra.mxu0 %v510
    %539 = vmatprep.subr.mxu0 0.0
    %540 = vmatpush1.msra.mxu0 %v509
    %541 = vmatprep.subr.mxu0 0.0
    %542 = vmatpush1.msra.mxu0 %v508
    %543 = vmatprep.subr.mxu0 0.0
    %544 = vmatpush1.msra.mxu0 %v507
    %545 = vmatprep.subr.mxu0 0.0
    %546 = vmatpush1.msra.mxu0 %v506
    %547 = vmatprep.subr.mxu0 0.0
    %548 = vmatpush1.msra.mxu0 %v505
    %549 = vmatprep.subr.mxu0 0.0
    %550 = vmatpush1.msra.mxu0 %v504
    %551 = vmatprep.subr.mxu0 0.0
    %552 = vmatpush1.msra.mxu0 %v503
    %553 = vmatprep.subr.mxu0 0.0
    %554 = vmatpush1.msra.mxu0 %v502
    %555 = vmatprep.subr.mxu0 0.0
    %556 = vmatpush2.msra.mxu0 0.0
    %557 = vmatprep.subr.mxu0 0.0
    %558 = vmatpush2.msra.mxu0 0.0
    %559 = vmatprep.subr.mxu0 0.0
    %560 = vmatpush2.msra.mxu0 0.0
    %561 = vmatprep.subr.mxu0 0.0
    %562 = vmatpush2.msra.mxu0 0.0
    %563 = vmatprep.subr.mxu0 0.0
    %564 = vmatpush2.msra.mxu0 0.0
    %565 = vmatprep.subr.mxu0 0.0
    %566 = vmatpush2.msra.mxu0 0.0
    %567 = vmatprep.subr.mxu0 0.0
    %568 = vmatpush2.msra.mxu0 0.0
    %569 = vmatprep.subr.mxu0 0.0
    %570 = vmatpush2.msra.mxu0 0.0
    %571 = vmatprep.subr.mxu0 0.0
    %572 = vmatpush2.msra.mxu0 0.0
    %573 = vmatprep.subr.mxu0 0.0
    %574 = vmatpush2.msra.mxu0 0.0
    %575 = vmatprep.subr.mxu0 0.0
    %576 = vmatpush2.msra.mxu0 0.0
    %577 = vmatprep.subr.mxu0 0.0
    %578 = vmatpush2.msra.mxu0 0.0
    %579 = vmatprep.subr.mxu0 0.0
    %580 = vmatpush2.msra.mxu0 0.0
    %581 = vmatprep.subr.mxu0 0.0
    %582 = vmatpush2.msra.mxu0 0.0
    %583 = vmatprep.subr.mxu0 0.0
    %584 = vmatpush2.msra.mxu0 0.0
    %585 = vmatprep.subr.mxu0 0.0
    %586 = vmatpush2.msra.mxu0 0.0
    %587 = vmatprep.mubr.f32.mxu0 0.0
    %588 = vmatmul.mubr.f32.gmra.mxu0 %v493
    %v589 = vpop.f32.mrf.mxu0
    %v590 = vadd.f32 %v522, %v589
    %v591 = vpop.f32.mrf.mxu0
    %592 = vmatprep.mubr.f32.mxu0 0.0
    %593 = vmatmul.mubr.f32.gmra.mxu0 %v494
    %v594 = vpop.f32.mrf.mxu0
    %v595 = vadd.f32 %v522, %v594
    %v596 = vpop.f32.mrf.mxu0
    %597 = vmatprep.mubr.f32.mxu0 0.0
    %598 = vmatmul.mubr.f32.gmra.mxu0 %v495
    %v599 = vpop.f32.mrf.mxu0
    %v600 = vadd.f32 %v522, %v599
    %v601 = vpop.f32.mrf.mxu0
    %602 = vmatprep.mubr.f32.mxu0 0.0
    %603 = vmatmul.mubr.f32.gmra.mxu0 %v496
    %v604 = vpop.f32.mrf.mxu0
    %v605 = vadd.f32 %v522, %v604
    %v606 = vpop.f32.mrf.mxu0
    %607 = vmatprep.mubr.f32.mxu0 0.0
    %608 = vmatmul.mubr.f32.gmra.mxu0 %v497
    %v609 = vpop.f32.mrf.mxu0
    %v610 = vadd.f32 %v522, %v609
    %v611 = vpop.f32.mrf.mxu0
    %612 = vmatprep.mubr.f32.mxu0 0.0
    %613 = vmatmul.mubr.f32.gmra.mxu0 %v498
    %v614 = vpop.f32.mrf.mxu0
    %v615 = vadd.f32 %v522, %v614
    %v616 = vpop.f32.mrf.mxu0
    %617 = vmatprep.mubr.f32.mxu0 0.0
    %618 = vmatmul.mubr.f32.gmra.mxu0 %v499
    %v619 = vpop.f32.mrf.mxu0
    %v620 = vadd.f32 %v522, %v619
    %v621 = vpop.f32.mrf.mxu0
    %622 = vmatprep.mubr.f32.mxu0 0.0
    %623 = vmatmul.mubr.f32.gmra.mxu0 %v500
    %v624 = vpop.f32.mrf.mxu0
    %v625 = vadd.f32 %v522, %v624
    %v626 = vpop.f32.mrf.mxu0
    %627 = vdwg.mxu0
    %v628 = vxor.u32 %v590, 2147483648
    %v629 = vxor.u32 %v595, 2147483648
    %v630 = vxor.u32 %v600, 2147483648
    %v631 = vxor.u32 %v605, 2147483648
    %v632 = vxor.u32 %v610, 2147483648
    %v633 = vxor.u32 %v615, 2147483648
    %v634 = vxor.u32 %v620, 2147483648
    %v635 = vxor.u32 %v625, 2147483648
    %v636 = vmul.f32 %v628, 1.442695
    %v637 = vpow.pop %v636
    %v638 = vmul.f32 %v629, 1.442695
    %v639 = vpow.pop %v638
    %v640 = vmul.f32 %v630, 1.442695
    %v641 = vpow.pop %v640
    %v642 = vmul.f32 %v631, 1.442695
    %v643 = vpow.pop %v642
    %v644 = vmul.f32 %v632, 1.442695
    %v645 = vpow.pop %v644
    %v646 = vmul.f32 %v633, 1.442695
    %v647 = vpow.pop %v646
    %v648 = vmul.f32 %v634, 1.442695
    %v649 = vpow.pop %v648
    %v650 = vmul.f32 %v635, 1.442695
    %v651 = vpow.pop %v650
    %v652 = vadd.f32 %v637, 1.0
    %v653 = vadd.f32 %v639, 1.0
    %v654 = vadd.f32 %v641, 1.0
    %v655 = vadd.f32 %v643, 1.0
    %v656 = vadd.f32 %v645, 1.0
    %v657 = vadd.f32 %v647, 1.0
    %v658 = vadd.f32 %v649, 1.0
    %v659 = vadd.f32 %v651, 1.0
    %v660 = vrcp.pop %v652
    %v661 = vmul.f32 1.0, %v660
    %v662 = vrcp.pop %v653
    %v663 = vmul.f32 1.0, %v662
    %v664 = vrcp.pop %v654
    %v665 = vmul.f32 1.0, %v664
    %v666 = vrcp.pop %v655
    %v667 = vmul.f32 1.0, %v666
    %v668 = vrcp.pop %v656
    %v669 = vmul.f32 1.0, %v668
    %v670 = vrcp.pop %v657
    %v671 = vmul.f32 1.0, %v670
    %v672 = vrcp.pop %v658
    %v673 = vmul.f32 1.0, %v672
    %v674 = vrcp.pop %v659
    %v675 = vmul.f32 1.0, %v674
    %s676 = scalar_lea.vmem [#allocation7], 384
    %v677 = vld [vmem:[%s676] sm:$0xff]
    %v678 = vld [vmem:[%s676 + $0x8] sm:$0xff]
    %v679 = vld [vmem:[%s676 + $0x10] sm:$0xff]
    %v680 = vld [vmem:[%s676 + $0x18] sm:$0xff]
    %v681 = vld [vmem:[%s676 + $0x20] sm:$0xff]
    %v682 = vld [vmem:[%s676 + $0x28] sm:$0xff]
    %v683 = vld [vmem:[%s676 + $0x30] sm:$0xff]
    %v684 = vld [vmem:[%s676 + $0x38] sm:$0xff]
    %v685 = vld [vmem:[%s676 + $0x40] sm:$0xff]
    %v686 = vld [vmem:[%s676 + $0x48] sm:$0xff]
    %v687 = vld [vmem:[%s676 + $0x50] sm:$0xff]
    %v688 = vld [vmem:[%s676 + $0x58] sm:$0xff]
    %v689 = vld [vmem:[%s676 + $0x60] sm:$0xff]
    %v690 = vld [vmem:[%s676 + $0x68] sm:$0xff]
    %v691 = vld [vmem:[%s676 + $0x70] sm:$0xff]
    %v692 = vld [vmem:[%s676 + $0x78] sm:$0xff]
    %v693 = vld [vmem:[#allocation10 + $0x4] sm:$0x1]
    %v694 = vlaneseq
    %v695 = vshrl.u32 %v694, 7
    %v696 = vsub.s32 0, %v695
    %v697 = vrot.slane %v693, %v696
    %698 = vmatprep.subr.mxu0 0.0
    %699 = vmatpush1.msra.mxu0 %v692
    %700 = vmatprep.subr.mxu0 0.0
    %701 = vmatpush1.msra.mxu0 %v691
    %702 = vmatprep.subr.mxu0 0.0
    %703 = vmatpush1.msra.mxu0 %v690
    %704 = vmatprep.subr.mxu0 0.0
    %705 = vmatpush1.msra.mxu0 %v689
    %706 = vmatprep.subr.mxu0 0.0
    %707 = vmatpush1.msra.mxu0 %v688
    %708 = vmatprep.subr.mxu0 0.0
    %709 = vmatpush1.msra.mxu0 %v687
    %710 = vmatprep.subr.mxu0 0.0
    %711 = vmatpush1.msra.mxu0 %v686
    %712 = vmatprep.subr.mxu0 0.0
    %713 = vmatpush1.msra.mxu0 %v685
    %714 = vmatprep.subr.mxu0 0.0
    %715 = vmatpush1.msra.mxu0 %v684
    %716 = vmatprep.subr.mxu0 0.0
    %717 = vmatpush1.msra.mxu0 %v683
    %718 = vmatprep.subr.mxu0 0.0
    %719 = vmatpush1.msra.mxu0 %v682
    %720 = vmatprep.subr.mxu0 0.0
    %721 = vmatpush1.msra.mxu0 %v681
    %722 = vmatprep.subr.mxu0 0.0
    %723 = vmatpush1.msra.mxu0 %v680
    %724 = vmatprep.subr.mxu0 0.0
    %725 = vmatpush1.msra.mxu0 %v679
    %726 = vmatprep.subr.mxu0 0.0
    %727 = vmatpush1.msra.mxu0 %v678
    %728 = vmatprep.subr.mxu0 0.0
    %729 = vmatpush1.msra.mxu0 %v677
    %730 = vmatprep.subr.mxu0 0.0
    %731 = vmatpush2.msra.mxu0 0.0
    %732 = vmatprep.subr.mxu0 0.0
    %733 = vmatpush2.msra.mxu0 0.0
    %734 = vmatprep.subr.mxu0 0.0
    %735 = vmatpush2.msra.mxu0 0.0
    %736 = vmatprep.subr.mxu0 0.0
    %737 = vmatpush2.msra.mxu0 0.0
    %738 = vmatprep.subr.mxu0 0.0
    %739 = vmatpush2.msra.mxu0 0.0
    %740 = vmatprep.subr.mxu0 0.0
    %741 = vmatpush2.msra.mxu0 0.0
    %742 = vmatprep.subr.mxu0 0.0
    %743 = vmatpush2.msra.mxu0 0.0
    %744 = vmatprep.subr.mxu0 0.0
    %745 = vmatpush2.msra.mxu0 0.0
    %746 = vmatprep.subr.mxu0 0.0
    %747 = vmatpush2.msra.mxu0 0.0
    %748 = vmatprep.subr.mxu0 0.0
    %749 = vmatpush2.msra.mxu0 0.0
    %750 = vmatprep.subr.mxu0 0.0
    %751 = vmatpush2.msra.mxu0 0.0
    %752 = vmatprep.subr.mxu0 0.0
    %753 = vmatpush2.msra.mxu0 0.0
    %754 = vmatprep.subr.mxu0 0.0
    %755 = vmatpush2.msra.mxu0 0.0
    %756 = vmatprep.subr.mxu0 0.0
    %757 = vmatpush2.msra.mxu0 0.0
    %758 = vmatprep.subr.mxu0 0.0
    %759 = vmatpush2.msra.mxu0 0.0
    %760 = vmatprep.subr.mxu0 0.0
    %761 = vmatpush2.msra.mxu0 0.0
    %762 = vmatprep.mubr.f32.mxu0 0.0
    %763 = vmatmul.mubr.f32.gmra.mxu0 %v661
    %v764 = vpop.f32.mrf.mxu0
    %v765 = vadd.f32 %v697, %v764
    %v766 = vpop.f32.mrf.mxu0
    %767 = vmatprep.mubr.f32.mxu0 0.0
    %768 = vmatmul.mubr.f32.gmra.mxu0 %v663
    %v769 = vpop.f32.mrf.mxu0
    %v770 = vadd.f32 %v697, %v769
    %v771 = vpop.f32.mrf.mxu0
    %772 = vmatprep.mubr.f32.mxu0 0.0
    %773 = vmatmul.mubr.f32.gmra.mxu0 %v665
    %v774 = vpop.f32.mrf.mxu0
    %v775 = vadd.f32 %v697, %v774
    %v776 = vpop.f32.mrf.mxu0
    %777 = vmatprep.mubr.f32.mxu0 0.0
    %778 = vmatmul.mubr.f32.gmra.mxu0 %v667
    %v779 = vpop.f32.mrf.mxu0
    %v780 = vadd.f32 %v697, %v779
    %v781 = vpop.f32.mrf.mxu0
    %782 = vmatprep.mubr.f32.mxu0 0.0
    %783 = vmatmul.mubr.f32.gmra.mxu0 %v669
    %v784 = vpop.f32.mrf.mxu0
    %v785 = vadd.f32 %v697, %v784
    %v786 = vpop.f32.mrf.mxu0
    %787 = vmatprep.mubr.f32.mxu0 0.0
    %788 = vmatmul.mubr.f32.gmra.mxu0 %v671
    %v789 = vpop.f32.mrf.mxu0
    %v790 = vadd.f32 %v697, %v789
    %v791 = vpop.f32.mrf.mxu0
    %792 = vmatprep.mubr.f32.mxu0 0.0
    %793 = vmatmul.mubr.f32.gmra.mxu0 %v673
    %v794 = vpop.f32.mrf.mxu0
    %v795 = vadd.f32 %v697, %v794
    %v796 = vpop.f32.mrf.mxu0
    %797 = vmatprep.mubr.f32.mxu0 0.0
    %798 = vmatmul.mubr.f32.gmra.mxu0 %v675
    %v799 = vpop.f32.mrf.mxu0
    %v800 = vadd.f32 %v697, %v799
    %v801 = vpop.f32.mrf.mxu0
    %802 = vdwg.mxu0
    %v803 = vmax.f32 %v765, 0.0
    %v804 = vmax.f32 %v770, 0.0
    %v805 = vmax.f32 %v775, 0.0
    %v806 = vmax.f32 %v780, 0.0
    %v807 = vmax.f32 %v785, 0.0
    %v808 = vmax.f32 %v790, 0.0
    %v809 = vmax.f32 %v795, 0.0
    %v810 = vmax.f32 %v800, 0.0
    %s811 = scalar_lea.vmem [#allocation7], 512
    %v812 = vld [vmem:[%s811] sm:$0xff]
    %v813 = vld [vmem:[%s811 + $0x8] sm:$0xff]
    %v814 = vld [vmem:[%s811 + $0x10] sm:$0xff]
    %v815 = vld [vmem:[%s811 + $0x18] sm:$0xff]
    %v816 = vld [vmem:[%s811 + $0x20] sm:$0xff]
    %v817 = vld [vmem:[%s811 + $0x28] sm:$0xff]
    %v818 = vld [vmem:[%s811 + $0x30] sm:$0xff]
    %v819 = vld [vmem:[%s811 + $0x38] sm:$0xff]
    %v820 = vld [vmem:[%s811 + $0x40] sm:$0xff]
    %v821 = vld [vmem:[%s811 + $0x48] sm:$0xff]
    %v822 = vld [vmem:[%s811 + $0x50] sm:$0xff]
    %v823 = vld [vmem:[%s811 + $0x58] sm:$0xff]
    %v824 = vld [vmem:[%s811 + $0x60] sm:$0xff]
    %v825 = vld [vmem:[%s811 + $0x68] sm:$0xff]
    %v826 = vld [vmem:[%s811 + $0x70] sm:$0xff]
    %v827 = vld [vmem:[%s811 + $0x78] sm:$0xff]
    %v828 = vld [vmem:[#allocation10 + $0x5] sm:$0x1]
    %v829 = vlaneseq
    %v830 = vshrl.u32 %v829, 7
    %v831 = vsub.s32 0, %v830
    %v832 = vrot.slane %v828, %v831
    %833 = vmatprep.subr.mxu0 0.0
    %834 = vmatpush1.msra.mxu0 %v827
    %835 = vmatprep.subr.mxu0 0.0
    %836 = vmatpush1.msra.mxu0 %v826
    %837 = vmatprep.subr.mxu0 0.0
    %838 = vmatpush1.msra.mxu0 %v825
    %839 = vmatprep.subr.mxu0 0.0
    %840 = vmatpush1.msra.mxu0 %v824
    %841 = vmatprep.subr.mxu0 0.0
    %842 = vmatpush1.msra.mxu0 %v823
    %843 = vmatprep.subr.mxu0 0.0
    %844 = vmatpush1.msra.mxu0 %v822
    %845 = vmatprep.subr.mxu0 0.0
    %846 = vmatpush1.msra.mxu0 %v821
    %847 = vmatprep.subr.mxu0 0.0
    %848 = vmatpush1.msra.mxu0 %v820
    %849 = vmatprep.subr.mxu0 0.0
    %850 = vmatpush1.msra.mxu0 %v819
    %851 = vmatprep.subr.mxu0 0.0
    %852 = vmatpush1.msra.mxu0 %v818
    %853 = vmatprep.subr.mxu0 0.0
    %854 = vmatpush1.msra.mxu0 %v817
    %855 = vmatprep.subr.mxu0 0.0
    %856 = vmatpush1.msra.mxu0 %v816
    %857 = vmatprep.subr.mxu0 0.0
    %858 = vmatpush1.msra.mxu0 %v815
    %859 = vmatprep.subr.mxu0 0.0
    %860 = vmatpush1.msra.mxu0 %v814
    %861 = vmatprep.subr.mxu0 0.0
    %862 = vmatpush1.msra.mxu0 %v813
    %863 = vmatprep.subr.mxu0 0.0
    %864 = vmatpush1.msra.mxu0 %v812
    %865 = vmatprep.subr.mxu0 0.0
    %866 = vmatpush2.msra.mxu0 0.0
    %867 = vmatprep.subr.mxu0 0.0
    %868 = vmatpush2.msra.mxu0 0.0
    %869 = vmatprep.subr.mxu0 0.0
    %870 = vmatpush2.msra.mxu0 0.0
    %871 = vmatprep.subr.mxu0 0.0
    %872 = vmatpush2.msra.mxu0 0.0
    %873 = vmatprep.subr.mxu0 0.0
    %874 = vmatpush2.msra.mxu0 0.0
    %875 = vmatprep.subr.mxu0 0.0
    %876 = vmatpush2.msra.mxu0 0.0
    %877 = vmatprep.subr.mxu0 0.0
    %878 = vmatpush2.msra.mxu0 0.0
    %879 = vmatprep.subr.mxu0 0.0
    %880 = vmatpush2.msra.mxu0 0.0
    %881 = vmatprep.subr.mxu0 0.0
    %882 = vmatpush2.msra.mxu0 0.0
    %883 = vmatprep.subr.mxu0 0.0
    %884 = vmatpush2.msra.mxu0 0.0
    %885 = vmatprep.subr.mxu0 0.0
    %886 = vmatpush2.msra.mxu0 0.0
    %887 = vmatprep.subr.mxu0 0.0
    %888 = vmatpush2.msra.mxu0 0.0
    %889 = vmatprep.subr.mxu0 0.0
    %890 = vmatpush2.msra.mxu0 0.0
    %891 = vmatprep.subr.mxu0 0.0
    %892 = vmatpush2.msra.mxu0 0.0
    %893 = vmatprep.subr.mxu0 0.0
    %894 = vmatpush2.msra.mxu0 0.0
    %895 = vmatprep.subr.mxu0 0.0
    %896 = vmatpush2.msra.mxu0 0.0
    %897 = vmatprep.mubr.f32.mxu0 0.0
    %898 = vmatmul.mubr.f32.gmra.mxu0 %v803
    %v899 = vpop.f32.mrf.mxu0
    %v900 = vadd.f32 %v832, %v899
    %v901 = vpop.f32.mrf.mxu0
    %902 = vmatprep.mubr.f32.mxu0 0.0
    %903 = vmatmul.mubr.f32.gmra.mxu0 %v804
    %v904 = vpop.f32.mrf.mxu0
    %v905 = vadd.f32 %v832, %v904
    %v906 = vpop.f32.mrf.mxu0
    %907 = vmatprep.mubr.f32.mxu0 0.0
    %908 = vmatmul.mubr.f32.gmra.mxu0 %v805
    %v909 = vpop.f32.mrf.mxu0
    %v910 = vadd.f32 %v832, %v909
    %v911 = vpop.f32.mrf.mxu0
    %912 = vmatprep.mubr.f32.mxu0 0.0
    %913 = vmatmul.mubr.f32.gmra.mxu0 %v806
    %v914 = vpop.f32.mrf.mxu0
    %v915 = vadd.f32 %v832, %v914
    %v916 = vpop.f32.mrf.mxu0
    %917 = vmatprep.mubr.f32.mxu0 0.0
    %918 = vmatmul.mubr.f32.gmra.mxu0 %v807
    %v919 = vpop.f32.mrf.mxu0
    %v920 = vadd.f32 %v832, %v919
    %v921 = vpop.f32.mrf.mxu0
    %922 = vmatprep.mubr.f32.mxu0 0.0
    %923 = vmatmul.mubr.f32.gmra.mxu0 %v808
    %v924 = vpop.f32.mrf.mxu0
    %v925 = vadd.f32 %v832, %v924
    %v926 = vpop.f32.mrf.mxu0
    %927 = vmatprep.mubr.f32.mxu0 0.0
    %928 = vmatmul.mubr.f32.gmra.mxu0 %v809
    %v929 = vpop.f32.mrf.mxu0
    %v930 = vadd.f32 %v832, %v929
    %v931 = vpop.f32.mrf.mxu0
    %932 = vmatprep.mubr.f32.mxu0 0.0
    %933 = vmatmul.mubr.f32.gmra.mxu0 %v810
    %v934 = vpop.f32.mrf.mxu0
    %v935 = vadd.f32 %v832, %v934
    %v936 = vpop.f32.mrf.mxu0
    %937 = vdwg.mxu0
    %v938 = vmax.f32 %v900, 0.0
    %v939 = vmax.f32 %v905, 0.0
    %v940 = vmax.f32 %v910, 0.0
    %v941 = vmax.f32 %v915, 0.0
    %v942 = vmax.f32 %v920, 0.0
    %v943 = vmax.f32 %v925, 0.0
    %v944 = vmax.f32 %v930, 0.0
    %v945 = vmax.f32 %v935, 0.0
    %s946 = scalar_lea.vmem [#allocation7], 640
    %v947 = vld [vmem:[%s946] sm:$0xff]
    %v948 = vld [vmem:[%s946 + $0x8] sm:$0xff]
    %v949 = vld [vmem:[%s946 + $0x10] sm:$0xff]
    %v950 = vld [vmem:[%s946 + $0x18] sm:$0xff]
    %v951 = vld [vmem:[%s946 + $0x20] sm:$0xff]
    %v952 = vld [vmem:[%s946 + $0x28] sm:$0xff]
    %v953 = vld [vmem:[%s946 + $0x30] sm:$0xff]
    %v954 = vld [vmem:[%s946 + $0x38] sm:$0xff]
    %v955 = vld [vmem:[%s946 + $0x40] sm:$0xff]
    %v956 = vld [vmem:[%s946 + $0x48] sm:$0xff]
    %v957 = vld [vmem:[%s946 + $0x50] sm:$0xff]
    %v958 = vld [vmem:[%s946 + $0x58] sm:$0xff]
    %v959 = vld [vmem:[%s946 + $0x60] sm:$0xff]
    %v960 = vld [vmem:[%s946 + $0x68] sm:$0xff]
    %v961 = vld [vmem:[%s946 + $0x70] sm:$0xff]
    %v962 = vld [vmem:[%s946 + $0x78] sm:$0xff]
    %v963 = vld [vmem:[#allocation10 + $0x6] sm:$0x1]
    %v964 = vlaneseq
    %v965 = vshrl.u32 %v964, 7
    %v966 = vsub.s32 0, %v965
    %v967 = vrot.slane %v963, %v966
    %968 = vmatprep.subr.mxu0 0.0
    %969 = vmatpush1.msra.mxu0 %v962
    %970 = vmatprep.subr.mxu0 0.0
    %971 = vmatpush1.msra.mxu0 %v961
    %972 = vmatprep.subr.mxu0 0.0
    %973 = vmatpush1.msra.mxu0 %v960
    %974 = vmatprep.subr.mxu0 0.0
    %975 = vmatpush1.msra.mxu0 %v959
    %976 = vmatprep.subr.mxu0 0.0
    %977 = vmatpush1.msra.mxu0 %v958
    %978 = vmatprep.subr.mxu0 0.0
    %979 = vmatpush1.msra.mxu0 %v957
    %980 = vmatprep.subr.mxu0 0.0
    %981 = vmatpush1.msra.mxu0 %v956
    %982 = vmatprep.subr.mxu0 0.0
    %983 = vmatpush1.msra.mxu0 %v955
    %984 = vmatprep.subr.mxu0 0.0
    %985 = vmatpush1.msra.mxu0 %v954
    %986 = vmatprep.subr.mxu0 0.0
    %987 = vmatpush1.msra.mxu0 %v953
    %988 = vmatprep.subr.mxu0 0.0
    %989 = vmatpush1.msra.mxu0 %v952
    %990 = vmatprep.subr.mxu0 0.0
    %991 = vmatpush1.msra.mxu0 %v951
    %992 = vmatprep.subr.mxu0 0.0
    %993 = vmatpush1.msra.mxu0 %v950
    %994 = vmatprep.subr.mxu0 0.0
    %995 = vmatpush1.msra.mxu0 %v949
    %996 = vmatprep.subr.mxu0 0.0
    %997 = vmatpush1.msra.mxu0 %v948
    %998 = vmatprep.subr.mxu0 0.0
    %999 = vmatpush1.msra.mxu0 %v947
    %1000 = vmatprep.subr.mxu0 0.0
    %1001 = vmatpush2.msra.mxu0 0.0
    %1002 = vmatprep.subr.mxu0 0.0
    %1003 = vmatpush2.msra.mxu0 0.0
    %1004 = vmatprep.subr.mxu0 0.0
    %1005 = vmatpush2.msra.mxu0 0.0
    %1006 = vmatprep.subr.mxu0 0.0
    %1007 = vmatpush2.msra.mxu0 0.0
    %1008 = vmatprep.subr.mxu0 0.0
    %1009 = vmatpush2.msra.mxu0 0.0
    %1010 = vmatprep.subr.mxu0 0.0
    %1011 = vmatpush2.msra.mxu0 0.0
    %1012 = vmatprep.subr.mxu0 0.0
    %1013 = vmatpush2.msra.mxu0 0.0
    %1014 = vmatprep.subr.mxu0 0.0
    %1015 = vmatpush2.msra.mxu0 0.0
    %1016 = vmatprep.subr.mxu0 0.0
    %1017 = vmatpush2.msra.mxu0 0.0
    %1018 = vmatprep.subr.mxu0 0.0
    %1019 = vmatpush2.msra.mxu0 0.0
    %1020 = vmatprep.subr.mxu0 0.0
    %1021 = vmatpush2.msra.mxu0 0.0
    %1022 = vmatprep.subr.mxu0 0.0
    %1023 = vmatpush2.msra.mxu0 0.0
    %1024 = vmatprep.subr.mxu0 0.0
    %1025 = vmatpush2.msra.mxu0 0.0
    %1026 = vmatprep.subr.mxu0 0.0
    %1027 = vmatpush2.msra.mxu0 0.0
    %1028 = vmatprep.subr.mxu0 0.0
    %1029 = vmatpush2.msra.mxu0 0.0
    %1030 = vmatprep.subr.mxu0 0.0
    %1031 = vmatpush2.msra.mxu0 0.0
    %1032 = vmatprep.mubr.f32.mxu0 0.0
    %1033 = vmatmul.mubr.f32.gmra.mxu0 %v938
    %v1034 = vpop.f32.mrf.mxu0
    %v1035 = vadd.f32 %v967, %v1034
    %v1036 = vpop.f32.mrf.mxu0
    %1037 = vmatprep.mubr.f32.mxu0 0.0
    %1038 = vmatmul.mubr.f32.gmra.mxu0 %v939
    %v1039 = vpop.f32.mrf.mxu0
    %v1040 = vadd.f32 %v967, %v1039
    %v1041 = vpop.f32.mrf.mxu0
    %1042 = vmatprep.mubr.f32.mxu0 0.0
    %1043 = vmatmul.mubr.f32.gmra.mxu0 %v940
    %v1044 = vpop.f32.mrf.mxu0
    %v1045 = vadd.f32 %v967, %v1044
    %v1046 = vpop.f32.mrf.mxu0
    %1047 = vmatprep.mubr.f32.mxu0 0.0
    %1048 = vmatmul.mubr.f32.gmra.mxu0 %v941
    %v1049 = vpop.f32.mrf.mxu0
    %v1050 = vadd.f32 %v967, %v1049
    %v1051 = vpop.f32.mrf.mxu0
    %1052 = vmatprep.mubr.f32.mxu0 0.0
    %1053 = vmatmul.mubr.f32.gmra.mxu0 %v942
    %v1054 = vpop.f32.mrf.mxu0
    %v1055 = vadd.f32 %v967, %v1054
    %v1056 = vpop.f32.mrf.mxu0
    %1057 = vmatprep.mubr.f32.mxu0 0.0
    %1058 = vmatmul.mubr.f32.gmra.mxu0 %v943
    %v1059 = vpop.f32.mrf.mxu0
    %v1060 = vadd.f32 %v967, %v1059
    %v1061 = vpop.f32.mrf.mxu0
    %1062 = vmatprep.mubr.f32.mxu0 0.0
    %1063 = vmatmul.mubr.f32.gmra.mxu0 %v944
    %v1064 = vpop.f32.mrf.mxu0
    %v1065 = vadd.f32 %v967, %v1064
    %v1066 = vpop.f32.mrf.mxu0
    %1067 = vmatprep.mubr.f32.mxu0 0.0
    %1068 = vmatmul.mubr.f32.gmra.mxu0 %v945
    %v1069 = vpop.f32.mrf.mxu0
    %v1070 = vadd.f32 %v967, %v1069
    %v1071 = vpop.f32.mrf.mxu0
    %1072 = vdwg.mxu0
    %v1073 = vmax.f32 %v1035, 0.0
    %v1074 = vmax.f32 %v1040, 0.0
    %v1075 = vmax.f32 %v1045, 0.0
    %v1076 = vmax.f32 %v1050, 0.0
    %v1077 = vmax.f32 %v1055, 0.0
    %v1078 = vmax.f32 %v1060, 0.0
    %v1079 = vmax.f32 %v1065, 0.0
    %v1080 = vmax.f32 %v1070, 0.0
    %v1081 = vld [vmem:[#allocation8] sm:$0xff]
    %v1082 = vld [vmem:[#allocation8 + $0x8] sm:$0xff]
    %v1083 = vld [vmem:[#allocation8 + $0x10] sm:$0xff]
    %v1084 = vld [vmem:[#allocation8 + $0x18] sm:$0xff]
    %v1085 = vld [vmem:[#allocation8 + $0x20] sm:$0xff]
    %v1086 = vld [vmem:[#allocation8 + $0x28] sm:$0xff]
    %v1087 = vld [vmem:[#allocation8 + $0x30] sm:$0xff]
    %v1088 = vld [vmem:[#allocation8 + $0x38] sm:$0xff]
    %v1089 = vld [vmem:[#allocation8 + $0x40] sm:$0xff]
    %v1090 = vld [vmem:[#allocation8 + $0x48] sm:$0xff]
    %v1091 = vld [vmem:[#allocation8 + $0x50] sm:$0xff]
    %v1092 = vld [vmem:[#allocation8 + $0x58] sm:$0xff]
    %v1093 = vld [vmem:[#allocation8 + $0x60] sm:$0xff]
    %v1094 = vld [vmem:[#allocation8 + $0x68] sm:$0xff]
    %v1095 = vld [vmem:[#allocation8 + $0x70] sm:$0xff]
    %v1096 = vld [vmem:[#allocation8 + $0x78] sm:$0xff]
    %v1097 = vld [vmem:[%s5] sm:$0x1]
    %v1099 = vlaneseq
    %v1100 = vshrl.u32 %v1099, 7
    %v1101 = vsub.s32 0, %v1100
    %v1102 = vrot.slane %v1097, %v1101
    %1104 = vmatprep.subr.mxu0 0.0
    %1105 = vmatpush1.msra.mxu0 %v1096
    %1106 = vmatprep.subr.mxu0 0.0
    %1107 = vmatpush1.msra.mxu0 %v1095
    %1108 = vmatprep.subr.mxu0 0.0
    %1109 = vmatpush1.msra.mxu0 %v1094
    %1110 = vmatprep.subr.mxu0 0.0
    %1111 = vmatpush1.msra.mxu0 %v1093
    %1112 = vmatprep.subr.mxu0 0.0
    %1113 = vmatpush1.msra.mxu0 %v1092
    %1114 = vmatprep.subr.mxu0 0.0
    %1115 = vmatpush1.msra.mxu0 %v1091
    %1116 = vmatprep.subr.mxu0 0.0
    %1117 = vmatpush1.msra.mxu0 %v1090
    %1118 = vmatprep.subr.mxu0 0.0
    %1119 = vmatpush1.msra.mxu0 %v1089
    %1120 = vmatprep.subr.mxu0 0.0
    %1121 = vmatpush1.msra.mxu0 %v1088
    %1122 = vmatprep.subr.mxu0 0.0
    %1123 = vmatpush1.msra.mxu0 %v1087
    %1124 = vmatprep.subr.mxu0 0.0
    %1125 = vmatpush1.msra.mxu0 %v1086
    %1126 = vmatprep.subr.mxu0 0.0
    %1127 = vmatpush1.msra.mxu0 %v1085
    %1128 = vmatprep.subr.mxu0 0.0
    %1129 = vmatpush1.msra.mxu0 %v1084
    %1130 = vmatprep.subr.mxu0 0.0
    %1131 = vmatpush1.msra.mxu0 %v1083
    %1132 = vmatprep.subr.mxu0 0.0
    %1133 = vmatpush1.msra.mxu0 %v1082
    %1134 = vmatprep.subr.mxu0 0.0
    %1135 = vmatpush1.msra.mxu0 %v1081
    %1136 = vmatprep.subr.mxu0 0.0
    %1137 = vmatpush2.msra.mxu0 0.0
    %1138 = vmatprep.subr.mxu0 0.0
    %1139 = vmatpush2.msra.mxu0 0.0
    %1140 = vmatprep.subr.mxu0 0.0
    %1141 = vmatpush2.msra.mxu0 0.0
    %1142 = vmatprep.subr.mxu0 0.0
    %1143 = vmatpush2.msra.mxu0 0.0
    %1144 = vmatprep.subr.mxu0 0.0
    %1145 = vmatpush2.msra.mxu0 0.0
    %1146 = vmatprep.subr.mxu0 0.0
    %1147 = vmatpush2.msra.mxu0 0.0
    %1148 = vmatprep.subr.mxu0 0.0
    %1149 = vmatpush2.msra.mxu0 0.0
    %1150 = vmatprep.subr.mxu0 0.0
    %1151 = vmatpush2.msra.mxu0 0.0
    %1152 = vmatprep.subr.mxu0 0.0
    %1153 = vmatpush2.msra.mxu0 0.0
    %1154 = vmatprep.subr.mxu0 0.0
    %1155 = vmatpush2.msra.mxu0 0.0
    %1156 = vmatprep.subr.mxu0 0.0
    %1157 = vmatpush2.msra.mxu0 0.0
    %1158 = vmatprep.subr.mxu0 0.0
    %1159 = vmatpush2.msra.mxu0 0.0
    %1160 = vmatprep.subr.mxu0 0.0
    %1161 = vmatpush2.msra.mxu0 0.0
    %1162 = vmatprep.subr.mxu0 0.0
    %1163 = vmatpush2.msra.mxu0 0.0
    %1164 = vmatprep.subr.mxu0 0.0
    %1165 = vmatpush2.msra.mxu0 0.0
    %1166 = vmatprep.subr.mxu0 0.0
    %1167 = vmatpush2.msra.mxu0 0.0
    %1168 = vmatprep.mubr.f32.mxu0 0.0
    %1169 = vmatmul.mubr.f32.gmra.mxu0 %v1073
    %v1170 = vpop.f32.mrf.mxu0
    %v1171 = vadd.f32 %v1102, %v1170
    %v1172 = vpop.f32.mrf.mxu0
    %1173 = vmatprep.mubr.f32.mxu0 0.0
    %1174 = vmatmul.mubr.f32.gmra.mxu0 %v1074
    %v1175 = vpop.f32.mrf.mxu0
    %v1176 = vadd.f32 %v1102, %v1175
    %v1177 = vpop.f32.mrf.mxu0
    %1178 = vmatprep.mubr.f32.mxu0 0.0
    %1179 = vmatmul.mubr.f32.gmra.mxu0 %v1075
    %v1180 = vpop.f32.mrf.mxu0
    %v1181 = vadd.f32 %v1102, %v1180
    %v1182 = vpop.f32.mrf.mxu0
    %1183 = vmatprep.mubr.f32.mxu0 0.0
    %1184 = vmatmul.mubr.f32.gmra.mxu0 %v1076
    %v1185 = vpop.f32.mrf.mxu0
    %v1186 = vadd.f32 %v1102, %v1185
    %v1187 = vpop.f32.mrf.mxu0
    %1188 = vmatprep.mubr.f32.mxu0 0.0
    %1189 = vmatmul.mubr.f32.gmra.mxu0 %v1077
    %v1190 = vpop.f32.mrf.mxu0
    %v1191 = vadd.f32 %v1102, %v1190
    %v1192 = vpop.f32.mrf.mxu0
    %1193 = vmatprep.mubr.f32.mxu0 0.0
    %1194 = vmatmul.mubr.f32.gmra.mxu0 %v1078
    %v1195 = vpop.f32.mrf.mxu0
    %v1196 = vadd.f32 %v1102, %v1195
    %v1197 = vpop.f32.mrf.mxu0
    %1198 = vmatprep.mubr.f32.mxu0 0.0
    %1199 = vmatmul.mubr.f32.gmra.mxu0 %v1079
    %v1200 = vpop.f32.mrf.mxu0
    %v1201 = vadd.f32 %v1102, %v1200
    %v1202 = vpop.f32.mrf.mxu0
    %1203 = vmatprep.mubr.f32.mxu0 0.0
    %1204 = vmatmul.mubr.f32.gmra.mxu0 %v1080
    %v1205 = vpop.f32.mrf.mxu0
    %v1206 = vadd.f32 %v1102, %v1205
    %v1207 = vpop.f32.mrf.mxu0
    %1208 = vdwg.mxu0
    %1209 = vst [vmem:[#allocation11] sm:$0xff] %v1171
    %1210 = vst [vmem:[#allocation11 + $0x8] sm:$0xff] %v1176
    %1211 = vst [vmem:[#allocation11 + $0x10] sm:$0xff] %v1181
    %1212 = vst [vmem:[#allocation11 + $0x18] sm:$0xff] %v1186
    %1213 = vst [vmem:[#allocation11 + $0x20] sm:$0xff] %v1191
    %1214 = vst [vmem:[#allocation11 + $0x28] sm:$0xff] %v1196
    %1215 = vst [vmem:[#allocation11 + $0x30] sm:$0xff] %v1201
    %1216 = vst [vmem:[#allocation11 + $0x38] sm:$0xff] %v1206
    // Predicated region
    $region46: #{tpu_custom_call.1} parent=1 // pred_check
      _
    $region47: #{tpu_custom_call.1} parent=1 // pred_check_branch
      %1218 = sbr.rel (0) target = $region49
    $region48: #{tpu_custom_call.1} parent=1 // pred_region
      %s1220 = ssub.s32 1024, 1024
      %1221 = vsyncadd [#allocation4], %s1220
      %s1222 = sshll.u32 [#allocation11], 4
      %s1223 = int_to_ptr.vmem [resolvable:$true] %s1222
      %1228 = dma.vmem_to_hbm [thread:$0]  %s1223, 1024, %s6, [#allocation4], 128, 128, 8
    $region49: #{tpu_custom_call.1} parent=1 // pred_fallthru
      _
    // Predicated region
    $region50: #{tpu_custom_call.1} parent=1 // pred_check
      _
    $region51: #{tpu_custom_call.1} parent=1 // pred_check_branch
      %1230 = sbr.rel (0) target = $region53
    $region52: #{tpu_custom_call.1} parent=1 // pred_region
      %1231 = dma.done [#allocation4], 1024
    $region53: #{tpu_custom_call.1} parent=1 // pred_fallthru
      _
    %1232 = vsyncpa [#allocation3], 1
    %1233 = vsyncpa [#allocation6], 1
    %1234 = vsyncpa [#allocation9], 1
    %1235 = vsyncpa [#allocation4], 1

</llo_original>
